<compile_context>
chip_gen: v7x
topology: tpu7x:2x2x1
jax: 0.10.0
libtpu: 0.0.40
codegen_flags: <defaults>
</compile_context>

<pallas_src>
import jax
import jax.numpy as jnp
from jax.experimental import pallas as pl
from jax.experimental.pallas import tpu as pltpu


def _round_up(x, m):
    return ((x + m - 1) // m) * m


def _pad2d(x, rows, cols):
    r, c = x.shape
    if r == rows and c == cols:
        return x
    return jnp.pad(x, ((0, rows - r), (0, cols - c)))


def _tile_128(requested, dim):
    """Largest power-of-two multiple of 128 <= requested and <= round_up(dim, 128)."""
    cap = min(int(requested), _round_up(int(dim), 128))
    t = 128
    while t * 2 <= cap:
        t *= 2
    return t


def _vmem_limit(est_bytes):
    # Generous headroom, but never above v7x's 64 MiB per-TensorCore VMEM.
    return int(min(64 * 1024 * 1024, max(32 * 1024 * 1024, 2 * int(est_bytes))))


# ----------------------------------------------------------------------------
# Stage 1: per-user-tile aggregation (K-tiled over POIs) + multi-semantic
# fusion + user mixing.
#   acc += HG_up[i, k] @ [geo | seq | col][k]            (bf16 MXU, f32 acc)
#   at last k:
#     g, s, p = acc[:, :D], acc[:, D:2D], acc[:, 2D:3D]
#     msg_emb = agg @ Wa + gs @ Wb0 + gp @ Wb1 + sp @ Wb2 + gsp @ Wb3 + b
#     out     = msg_emb + users + msg_emb * users
# ----------------------------------------------------------------------------
def _user_fusion_kernel(hg_ref, pois3_ref, users_ref, wa_ref, wb_ref, b_ref,
                        o_ref, acc_ref):
    k = pl.program_id(1)

    @pl.when(k == 0)
    def _init():
        acc_ref[...] = jnp.zeros_like(acc_ref)

    # Cast the HG tile to the matmul dtype in-register (no-op when HG is
    # already stored as bf16 upstream).
    acc_ref[...] += jnp.dot(hg_ref[...].astype(pois3_ref.dtype), pois3_ref[...],
                            preferred_element_type=jnp.float32)

    @pl.when(k == pl.num_programs(1) - 1)
    def _finalize():
        D = o_ref.shape[-1]
        mx = wa_ref.dtype                        # bf16 MXU inputs
        agg = acc_ref[...]                       # [tu, 3D] f32: [g | s | p]
        g = agg[:, 0 * D:1 * D]
        s = agg[:, 1 * D:2 * D]
        p = agg[:, 2 * D:3 * D]
        gs = g * s
        gp = g * p
        sp = s * p
        gsp = gs * p

        # fusion Linear: one K=3D dot on the contiguous accumulator plus four
        # K=D dots on the products (bf16 inputs, f32 accumulation).
        msg_emb = jnp.dot(agg.astype(mx), wa_ref[...],
                          preferred_element_type=jnp.float32)
        for j, piece in enumerate((gs, gp, sp, gsp)):   # order matches torch.cat
            msg_emb = msg_emb + jnp.dot(piece.astype(mx),
                                        wb_ref[j * D:(j + 1) * D, :],
                                        preferred_element_type=jnp.float32)
        msg_emb = msg_emb + b_ref[...]

        u = users_ref[...].astype(jnp.float32)
        o_ref[...] = (msg_emb + u + msg_emb * u).astype(o_ref.dtype)


# ----------------------------------------------------------------------------
# Stage 2: propagate user embeddings back to POIs (K-tiled over users):
#   acc += HG_pu[i, k] @ hg_users_emb[k]
# ----------------------------------------------------------------------------
def _poi_propagate_kernel(hg_pu_ref, hu_ref, o_ref, acc_ref):
    k = pl.program_id(1)

    @pl.when(k == 0)
    def _init():
        acc_ref[...] = jnp.zeros_like(acc_ref)

    acc_ref[...] += jnp.dot(hg_pu_ref[...].astype(hu_ref.dtype), hu_ref[...],
                            preferred_element_type=jnp.float32)

    @pl.when(k == pl.num_programs(1) - 1)
    def _finalize():
        o_ref[...] = acc_ref[...].astype(o_ref.dtype)


def multi_semantic_hyperconv(col_pois_embs, geo_pois_embs, seq_pois_embs,
                             users_embs, HG_up, HG_pu, fusion_w, fusion_b,
                             *, user_tile=512, poi_tile=512, k_tile=1024,
                             matmul_dtype=jnp.bfloat16):
    """Forward pass of MultiSemanticHyperConvLayer.

    col/geo/seq_pois_embs: [P, D]   users_embs: [U, D]
    HG_up: [U, P]   HG_pu: [P, U]   dense 0/1 incidence.  NOTE: HG tiles are
      fed to the MXU in `matmul_dtype` (bf16) - exact for 0/1 entries; a
      weighted incidence matrix would be quantized.  Store HG as bf16 upstream
      to halve its HBM traffic (the demo does).
    fusion_w: [D, 7D] (PyTorch Linear weight)   fusion_b: [D]
    Returns propag_pois_embs: [P, D] float32.
    """
    P, D = col_pois_embs.shape
    U = users_embs.shape[0]

    # --- tile selection: powers of two x 128 so U and P each get ONE shared
    # padding that every stage's row/reduction tile divides. -----------------
    tu = _tile_128(user_tile, U)     # stage-1 user rows
    tku = _tile_128(k_tile, U)       # stage-2 reduction over users
    tp = _tile_128(poi_tile, P)      # stage-2 poi rows
    tkp = _tile_128(k_tile, P)       # stage-1 reduction over POIs
    Upad = _round_up(U, max(tu, tku))
    Ppad = _round_up(P, max(tp, tkp))
    # v7x has 2 TensorCores: make sure the "parallel" row axes have >= 2 blocks.
    if Upad // tu < 2 and Upad >= 256:
        tu //= 2
    if Ppad // tp < 2 and Ppad >= 256:
        tp //= 2

    # --- wrapper-side layout prep (all small relative to the HG reads) -------
    # Fused [geo | seq | col] RHS, bf16.
    pois3 = jnp.concatenate([geo_pois_embs, seq_pois_embs, col_pois_embs],
                            axis=1)
    pois3_p = _pad2d(pois3, Ppad, 3 * D).astype(matmul_dtype)
    users_p = _pad2d(users_embs, Upad, D).astype(jnp.float32)

    # HG matrices: zero-pad only (no dtype round trip here); dtype cast happens
    # in-register inside the kernel.  Padding must stay zero: padded user rows
    # of the stage-1 output carry the bias and rely on HG_pu's zero columns.
    hg_up_p = _pad2d(HG_up, Upad, Ppad)
    hg_pu_p = _pad2d(HG_pu, Ppad, Upad)

    wt = fusion_w.T.astype(matmul_dtype)          # [7D, D]
    wa = wt[:3 * D]                               # rows for  g, s, p
    wb = wt[3 * D:]                               # rows for  gs, gp, sp, gsp
    b = fusion_b.reshape(1, D).astype(jnp.float32)

    hg_up_bytes = jnp.dtype(hg_up_p.dtype).itemsize
    hg_pu_bytes = jnp.dtype(hg_pu_p.dtype).itemsize
    mmb = jnp.dtype(matmul_dtype).itemsize

    # --- stage 1: per-user aggregation + fusion ------------------------------
    grid1 = (Upad // tu, Ppad // tkp)
    est1 = (2 * tu * tkp * hg_up_bytes          # HG tile (double-buffered)
            + 2 * tkp * 3 * D * mmb             # pois3 tile
            + 2 * tu * D * 4                    # users tile
            + 2 * (3 * D * D + 4 * D * D) * mmb # fusion weights
            + 2 * D * 4                         # bias
            + 2 * tu * D * mmb                  # output tile
            + tu * 3 * D * 4)                   # f32 accumulator scratch
    cost1 = pl.CostEstimate(
        flops=2 * Upad * Ppad * 3 * D + 2 * Upad * 7 * D * D,
        transcendentals=0,
        bytes_accessed=(hg_up_p.size * hg_up_bytes + pois3_p.size * mmb
                        + users_p.size * 4 + (wa.size + wb.size) * mmb
                        + b.size * 4 + Upad * D * mmb))

    hg_users_emb = pl.pallas_call(
        _user_fusion_kernel,
        out_shape=jax.ShapeDtypeStruct((Upad, D), matmul_dtype),
        grid_spec=pltpu.PrefetchScalarGridSpec(
            num_scalar_prefetch=0,
            grid=grid1,
            in_specs=[
                pl.BlockSpec((tu, tkp), lambda i, k: (i, k)),       # HG_up tile
                pl.BlockSpec((tkp, 3 * D), lambda i, k: (k, 0)),    # [geo|seq|col]
                pl.BlockSpec((tu, D), lambda i, k: (i, 0)),         # users
                pl.BlockSpec((3 * D, D), lambda i, k: (0, 0)),      # W^T rows 0:3D
                pl.BlockSpec((4 * D, D), lambda i, k: (0, 0)),      # W^T rows 3D:7D
                pl.BlockSpec((1, D), lambda i, k: (0, 0)),          # bias
            ],
            out_specs=pl.BlockSpec((tu, D), lambda i, k: (i, 0)),
            scratch_shapes=[pltpu.VMEM((tu, 3 * D), jnp.float32)],
        ),
        compiler_params=pltpu.CompilerParams(
            dimension_semantics=("parallel", "arbitrary"),
            vmem_limit_bytes=_vmem_limit(est1),
            allow_input_fusion=[True] * 6),
        cost_estimate=cost1,
    )(hg_up_p, pois3_p, users_p, wa, wb, b)

    # --- stage 2: propagate back to POIs --------------------------------------
    # hg_users_emb is already padded to Upad and tku | Upad, so it feeds stage 2
    # directly (no slice / re-pad / extra HBM round trip).
    grid2 = (Ppad // tp, Upad // tku)
    est2 = (2 * tp * tku * hg_pu_bytes
            + 2 * tku * D * mmb
            + 2 * tp * D * 4
            + tp * D * 4)
    cost2 = pl.CostEstimate(
        flops=2 * Ppad * Upad * D,
        transcendentals=0,
        bytes_accessed=(hg_pu_p.size * hg_pu_bytes + Upad * D * mmb
                        + Ppad * D * 4))

    propag_pois_embs = pl.pallas_call(
        _poi_propagate_kernel,
        out_shape=jax.ShapeDtypeStruct((Ppad, D), jnp.float32),
        grid_spec=pltpu.PrefetchScalarGridSpec(
            num_scalar_prefetch=0,
            grid=grid2,
            in_specs=[
                pl.BlockSpec((tp, tku), lambda i, k: (i, k)),       # HG_pu tile
                pl.BlockSpec((tku, D), lambda i, k: (k, 0)),        # hg_users
            ],
            out_specs=pl.BlockSpec((tp, D), lambda i, k: (i, 0)),
            scratch_shapes=[pltpu.VMEM((tp, D), jnp.float32)],
        ),
        compiler_params=pltpu.CompilerParams(
            dimension_semantics=("parallel", "arbitrary"),
            vmem_limit_bytes=_vmem_limit(est2),
            allow_input_fusion=[True] * 2),
        cost_estimate=cost2,
    )(hg_pu_p, hg_users_emb)

    return propag_pois_embs[:P]


# ----------------------------------------------------------------------------
# Pure-JAX references for verification.
# ----------------------------------------------------------------------------
def _reference_f32(col, geo, seq, users, HG_up, HG_pu, W, b):
    hi = jax.lax.Precision.HIGHEST
    up = HG_up.astype(jnp.float32)
    pu = HG_pu.astype(jnp.float32)
    g = jnp.dot(up, geo, precision=hi)
    s = jnp.dot(up, seq, precision=hi)
    p = jnp.dot(up, col, precision=hi)
    msg = jnp.concatenate([g, s, p, g * s, g * p, s * p, g * s * p], axis=1)
    msg_emb = jnp.dot(msg, W.T, precision=hi) + b
    hg_users = msg_emb + users + msg_emb * users
    return jnp.dot(pu, hg_users, precision=hi)


def _reference_matched(col, geo, seq, users, HG_up, HG_pu, W, b):
    # Same math with the same bf16 quantization of MXU inputs as the kernel.
    bf = jnp.bfloat16
    up = HG_up.astype(bf)
    g = jnp.dot(up, geo.astype(bf), preferred_element_type=jnp.float32)
    s = jnp.dot(up, seq.astype(bf), preferred_element_type=jnp.float32)
    p = jnp.dot(up, col.astype(bf), preferred_element_type=jnp.float32)
    msg = jnp.concatenate([g, s, p, g * s, g * p, s * p, g * s * p],
                          axis=1).astype(bf)
    msg_emb = jnp.dot(msg, W.T.astype(bf),
                      preferred_element_type=jnp.float32) + b
    hg_users = (msg_emb + users + msg_emb * users).astype(bf)
    return jnp.dot(HG_pu.astype(bf), hg_users,
                   preferred_element_type=jnp.float32)


if __name__ == "__main__":
    D = 32        # emb_dim
    P = 160       # number of POIs
    U = 200       # number of users

    key = jax.random.PRNGKey(0)
    ks = jax.random.split(key, 8)

    col_pois = jax.random.normal(ks[0], (P, D), dtype=jnp.float32)
    geo_pois = jax.random.normal(ks[1], (P, D), dtype=jnp.float32)
    seq_pois = jax.random.normal(ks[2], (P, D), dtype=jnp.float32)
    users = jax.random.normal(ks[3], (U, D), dtype=jnp.float32)

    # Binary incidence matrices stored dense -- and stored directly as bf16
    # (0/1 is exact), which is the recommended upstream storage format.
    HG_up = (jax.random.uniform(ks[4], (U, P)) < 0.3).astype(jnp.bfloat16)
    HG_pu = (jax.random.uniform(ks[5], (P, U)) < 0.3).astype(jnp.bfloat16)

    # Deterministic nn.Linear(7*D, D) parameters (PyTorch-style uniform init).
    bound = 1.0 / float(jnp.sqrt(7.0 * D))
    fusion_w = jax.random.uniform(ks[6], (D, 7 * D), minval=-bound,
                                  maxval=bound, dtype=jnp.float32)
    fusion_b = jax.random.uniform(ks[7], (D,), minval=-bound, maxval=bound,
                                  dtype=jnp.float32)

    args = (col_pois, geo_pois, seq_pois, users, HG_up, HG_pu,
            fusion_w, fusion_b)

    ref_f32 = _reference_f32(*args)
    ref_bf16 = _reference_matched(*args)

    def relerr(a, b):
        return float(jnp.linalg.norm(a - b) / jnp.linalg.norm(b))

    # Run 1: small tiles so both the parallel and reduction grid axes have
    # multiple steps (exercises accumulator init/finalize and shared padding).
    out_small = multi_semantic_hyperconv(*args, user_tile=128, poi_tile=128,
                                         k_tile=128)
    out_small = jax.block_until_ready(out_small)
    assert out_small.shape == (P, D)
    assert relerr(out_small, ref_bf16) < 5e-3, relerr(out_small, ref_bf16)
    assert relerr(out_small, ref_f32) < 4e-2, relerr(out_small, ref_f32)

    # Run 2: default (large) tiles.
    out_big = jax.block_until_ready(multi_semantic_hyperconv(*args))
    assert out_big.shape == (P, D)
    assert relerr(out_big, ref_bf16) < 5e-3, relerr(out_big, ref_bf16)
    assert relerr(out_big, ref_f32) < 4e-2, relerr(out_big, ref_f32)

    print("KERNEL_OK")
</pallas_src>

<mosaic_0001>
module attributes {stable_mosaic.version = 11 : i64} {
  func.func @_user_fusion_kernel(%arg0: i32, %arg1: i32, %arg2: memref<128x128xbf16, #tpu.memory_space<vmem>>, %arg3: memref<128x96xbf16, #tpu.memory_space<vmem>>, %arg4: memref<128x32xf32, #tpu.memory_space<vmem>>, %arg5: memref<96x32xbf16, #tpu.memory_space<vmem>>, %arg6: memref<128x32xbf16, #tpu.memory_space<vmem>>, %arg7: memref<1x32xf32, #tpu.memory_space<vmem>>, %arg8: memref<128x32xbf16, #tpu.memory_space<vmem>>, %arg9: memref<128x96xf32, #tpu.memory_space<vmem>>) attributes {dimension_semantics = [#tpu.dimension_semantics<parallel>, #tpu.dimension_semantics<arbitrary>], iteration_bounds = array<i64: 2, 2>, scalar_prefetch = 0 : i64, scratch_operands = 1 : i64, tpu.core_type = #tpu.core_type<tc>, window_params = [{transform_indices = @transform_0, window_bounds = array<i64: 128, 128>}, {transform_indices = @transform_1, window_bounds = array<i64: 128, 96>}, {transform_indices = @transform_2, window_bounds = array<i64: 128, 32>}, {pipeline_mode = #tpu.pipeline_mode<synchronous>, transform_indices = @transform_3, window_bounds = array<i64: 96, 32>}, {pipeline_mode = #tpu.pipeline_mode<synchronous>, transform_indices = @transform_4, window_bounds = array<i64: 128, 32>}, {pipeline_mode = #tpu.pipeline_mode<synchronous>, transform_indices = @transform_5, window_bounds = array<i64: 1, 32>}, {transform_indices = @transform_6, window_bounds = array<i64: 128, 32>}]} {
    %c0_i32 = arith.constant 0 : i32
    %0 = arith.cmpi eq, %arg1, %c0_i32 : i32
    %1 = arith.extui %0 : i1 to i32
    %c0_i32_0 = arith.constant 0 : i32
    %2 = arith.cmpi ne, %1, %c0_i32_0 : i32
    scf.if %2 {
      %cst_9 = arith.constant 0.000000e+00 : f32
      %12 = vector.broadcast %cst_9 : f32 to vector<128x96xf32>
      %c0_10 = arith.constant 0 : index
      %c0_11 = arith.constant 0 : index
      %13 = vector.load %arg9[%c0_10, %c0_11] : memref<128x96xf32, #tpu.memory_space<vmem>>, vector<128x96xf32>
      tpu.vector_store %arg9[%c0_10, %c0_11], %12 {strides = array<i32>} : memref<128x96xf32, #tpu.memory_space<vmem>>, vector<128x96xf32>,
    } else {
    }
    %c0 = arith.constant 0 : index
    %c0_1 = arith.constant 0 : index
    %3 = vector.load %arg9[%c0, %c0_1] : memref<128x96xf32, #tpu.memory_space<vmem>>, vector<128x96xf32>
    %c0_2 = arith.constant 0 : index
    %c0_3 = arith.constant 0 : index
    %4 = vector.load %arg2[%c0_2, %c0_3] : memref<128x128xbf16, #tpu.memory_space<vmem>>, vector<128x128xbf16>
    %c0_4 = arith.constant 0 : index
    %c0_5 = arith.constant 0 : index
    %5 = vector.load %arg3[%c0_4, %c0_5] : memref<128x96xbf16, #tpu.memory_space<vmem>>, vector<128x96xbf16>
    %cst = arith.constant dense<0.000000e+00> : vector<128x96xf32>
    %6 = tpu.matmul %4, %5, %cst {dimension_numbers = #tpu.dot_dimension_numbers<[1], [0], [0], [1], [0, 0, 1, 1], [], []>} : vector<128x128xbf16>, vector<128x96xbf16>, vector<128x96xf32> -> vector<128x96xf32>
    %7 = arith.addf %3, %6 : vector<128x96xf32>
    %c0_6 = arith.constant 0 : index
    %c0_7 = arith.constant 0 : index
    %8 = vector.load %arg9[%c0_6, %c0_7] : memref<128x96xf32, #tpu.memory_space<vmem>>, vector<128x96xf32>
    tpu.vector_store %arg9[%c0_6, %c0_7], %7 {strides = array<i32>} : memref<128x96xf32, #tpu.memory_space<vmem>>, vector<128x96xf32>,
    %c1_i32 = arith.constant 1 : i32
    %9 = arith.cmpi eq, %arg1, %c1_i32 : i32
    %10 = arith.extui %9 : i1 to i32
    %c0_i32_8 = arith.constant 0 : i32
    %11 = arith.cmpi ne, %10, %c0_i32_8 : i32
    scf.if %11 {
      %c0_9 = arith.constant 0 : index
      %c0_10 = arith.constant 0 : index
      %12 = vector.load %arg9[%c0_9, %c0_10] : memref<128x96xf32, #tpu.memory_space<vmem>>, vector<128x96xf32>
      %13 = vector.extract_strided_slice %12 {offsets = [0, 0], sizes = [128, 32], strides = [1, 1]} : vector<128x96xf32> to vector<128x32xf32>
      %14 = vector.extract_strided_slice %12 {offsets = [0, 32], sizes = [128, 32], strides = [1, 1]} : vector<128x96xf32> to vector<128x32xf32>
      %15 = vector.extract_strided_slice %12 {offsets = [0, 64], sizes = [128, 32], strides = [1, 1]} : vector<128x96xf32> to vector<128x32xf32>
      %16 = arith.mulf %13, %14 : vector<128x32xf32>
      %17 = arith.mulf %13, %15 : vector<128x32xf32>
      %18 = arith.mulf %14, %15 : vector<128x32xf32>
      %19 = arith.mulf %16, %15 : vector<128x32xf32>
      %20 = arith.truncf %12 : vector<128x96xf32> to vector<128x96xbf16>
      %c0_11 = arith.constant 0 : index
      %c0_12 = arith.constant 0 : index
      %21 = vector.load %arg5[%c0_11, %c0_12] : memref<96x32xbf16, #tpu.memory_space<vmem>>, vector<96x32xbf16>
      %cst_13 = arith.constant dense<0.000000e+00> : vector<128x32xf32>
      %22 = tpu.matmul %20, %21, %cst_13 {dimension_numbers = #tpu.dot_dimension_numbers<[1], [0], [0], [1], [0, 0, 1, 1], [], []>} : vector<128x96xbf16>, vector<96x32xbf16>, vector<128x32xf32> -> vector<128x32xf32>
      %23 = arith.truncf %16 : vector<128x32xf32> to vector<128x32xbf16>
      %c0_14 = arith.constant 0 : index
      %c0_15 = arith.constant 0 : index
      %24 = vector.load %arg6[%c0_14, %c0_15] : memref<128x32xbf16, #tpu.memory_space<vmem>>, vector<32x32xbf16>
      %cst_16 = arith.constant dense<0.000000e+00> : vector<128x32xf32>
      %25 = tpu.matmul %23, %24, %cst_16 {dimension_numbers = #tpu.dot_dimension_numbers<[1], [0], [0], [1], [0, 0, 1, 1], [], []>} : vector<128x32xbf16>, vector<32x32xbf16>, vector<128x32xf32> -> vector<128x32xf32>
      %26 = arith.addf %22, %25 : vector<128x32xf32>
      %27 = arith.truncf %17 : vector<128x32xf32> to vector<128x32xbf16>
      %c32 = arith.constant 32 : index
      %c0_17 = arith.constant 0 : index
      %28 = vector.load %arg6[%c32, %c0_17] : memref<128x32xbf16, #tpu.memory_space<vmem>>, vector<32x32xbf16>
      %cst_18 = arith.constant dense<0.000000e+00> : vector<128x32xf32>
      %29 = tpu.matmul %27, %28, %cst_18 {dimension_numbers = #tpu.dot_dimension_numbers<[1], [0], [0], [1], [0, 0, 1, 1], [], []>} : vector<128x32xbf16>, vector<32x32xbf16>, vector<128x32xf32> -> vector<128x32xf32>
      %30 = arith.addf %26, %29 : vector<128x32xf32>
      %31 = arith.truncf %18 : vector<128x32xf32> to vector<128x32xbf16>
      %c64 = arith.constant 64 : index
      %c0_19 = arith.constant 0 : index
      %32 = vector.load %arg6[%c64, %c0_19] : memref<128x32xbf16, #tpu.memory_space<vmem>>, vector<32x32xbf16>
      %cst_20 = arith.constant dense<0.000000e+00> : vector<128x32xf32>
      %33 = tpu.matmul %31, %32, %cst_20 {dimension_numbers = #tpu.dot_dimension_numbers<[1], [0], [0], [1], [0, 0, 1, 1], [], []>} : vector<128x32xbf16>, vector<32x32xbf16>, vector<128x32xf32> -> vector<128x32xf32>
      %34 = arith.addf %30, %33 : vector<128x32xf32>
      %35 = arith.truncf %19 : vector<128x32xf32> to vector<128x32xbf16>
      %c96 = arith.constant 96 : index
      %c0_21 = arith.constant 0 : index
      %36 = vector.load %arg6[%c96, %c0_21] : memref<128x32xbf16, #tpu.memory_space<vmem>>, vector<32x32xbf16>
      %cst_22 = arith.constant dense<0.000000e+00> : vector<128x32xf32>
      %37 = tpu.matmul %35, %36, %cst_22 {dimension_numbers = #tpu.dot_dimension_numbers<[1], [0], [0], [1], [0, 0, 1, 1], [], []>} : vector<128x32xbf16>, vector<32x32xbf16>, vector<128x32xf32> -> vector<128x32xf32>
      %38 = arith.addf %34, %37 : vector<128x32xf32>
      %c0_23 = arith.constant 0 : index
      %c0_24 = arith.constant 0 : index
      %39 = vector.load %arg7[%c0_23, %c0_24] : memref<1x32xf32, #tpu.memory_space<vmem>>, vector<1x32xf32>
      %40 = vector.broadcast %39 : vector<1x32xf32> to vector<128x32xf32>
      %41 = arith.addf %38, %40 : vector<128x32xf32>
      %c0_25 = arith.constant 0 : index
      %c0_26 = arith.constant 0 : index
      %42 = vector.load %arg4[%c0_25, %c0_26] : memref<128x32xf32, #tpu.memory_space<vmem>>, vector<128x32xf32>
      %43 = arith.addf %41, %42 : vector<128x32xf32>
      %44 = arith.mulf %41, %42 : vector<128x32xf32>
      %45 = arith.addf %43, %44 : vector<128x32xf32>
      %46 = arith.truncf %45 : vector<128x32xf32> to vector<128x32xbf16>
      %c0_27 = arith.constant 0 : index
      %c0_28 = arith.constant 0 : index
      %47 = vector.load %arg8[%c0_27, %c0_28] : memref<128x32xbf16, #tpu.memory_space<vmem>>, vector<128x32xbf16>
      tpu.vector_store %arg8[%c0_27, %c0_28], %46 {strides = array<i32>} : memref<128x32xbf16, #tpu.memory_space<vmem>>, vector<128x32xbf16>,
    } else {
    }
    return
  }
  func.func @transform_0(%arg0: i32, %arg1: i32) -> (i32, i32) {
    %c0_i32 = arith.constant 0 : i32
    return %arg0, %arg1 : i32, i32
  }
  func.func @transform_1(%arg0: i32, %arg1: i32) -> (i32, i32) {
    %c0_i32 = arith.constant 0 : i32
    %c0_i32_0 = arith.constant 0 : i32
    return %arg1, %c0_i32 : i32, i32
  }
  func.func @transform_2(%arg0: i32, %arg1: i32) -> (i32, i32) {
    %c0_i32 = arith.constant 0 : i32
    %c0_i32_0 = arith.constant 0 : i32
    return %arg0, %c0_i32 : i32, i32
  }
  func.func @transform_3(%arg0: i32, %arg1: i32) -> (i32, i32) {
    %c0_i32 = arith.constant 0 : i32
    %c0_i32_0 = arith.constant 0 : i32
    %c0_i32_1 = arith.constant 0 : i32
    return %c0_i32, %c0_i32_0 : i32, i32
  }
  func.func @transform_4(%arg0: i32, %arg1: i32) -> (i32, i32) {
    %c0_i32 = arith.constant 0 : i32
    %c0_i32_0 = arith.constant 0 : i32
    %c0_i32_1 = arith.constant 0 : i32
    return %c0_i32, %c0_i32_0 : i32, i32
  }
  func.func @transform_5(%arg0: i32, %arg1: i32) -> (i32, i32) {
    %c0_i32 = arith.constant 0 : i32
    %c0_i32_0 = arith.constant 0 : i32
    %c0_i32_1 = arith.constant 0 : i32
    return %c0_i32, %c0_i32_0 : i32, i32
  }
  func.func @transform_6(%arg0: i32, %arg1: i32) -> (i32, i32) {
    %c0_i32 = arith.constant 0 : i32
    %c0_i32_0 = arith.constant 0 : i32
    return %arg0, %c0_i32 : i32, i32
  }
}

</mosaic_0001>

<llo_original>
// kernel: tpu_custom_call.1
$region0: #{tpu_custom_call.1}
  #allocation0 [shape = 'u32[]', space=smem, size = 0x4, offset = 0x4, fixed_abs, tag = 'smem constant byte address 0x4 - core index']
  #allocation1 [shape = 'u32[144,128]{1,0:T(1,128)}', space=vmem, size = 0x12000, scoped, tag = 'internal scratch']
  #allocation2 [shape = 'f32[128,96]{1,0:T(8,128)}', space=vmem, size = 0x10000, scoped, tag = 'scratch operand']
  %s0 = inlined_call_operand.vmem [shape: bf16[256,256], index: 0, kind: input, shape index: {}]
  %s1 = inlined_call_operand.vmem [shape: bf16[256,96], index: 1, kind: input, shape index: {}]
  %s2 = inlined_call_operand.vmem [shape: f32[256,32], index: 2, kind: input, shape index: {}]
  %s3 = inlined_call_operand.vmem [shape: bf16[96,32], index: 3, kind: input, shape index: {}]
  %s4 = inlined_call_operand.vmem [shape: bf16[128,32], index: 4, kind: input, shape index: {}]
  %s5 = inlined_call_operand.vmem [shape: f32[1,32], index: 5, kind: input, shape index: {}]
  %s6 = inlined_call_operand.vmem [shape: bf16[256,32], index: 6, kind: output, shape index: {}]
  %s7 = sld [smem:[#allocation0]]
  $region106: #{tpu_custom_call.1} parent=0
    _
  %s9 = ssub.s32 1, %s7
  %s10 = scalar_select 0, %s9, %s7
  $region1: #{tpu_custom_call.1} parent=0
    #allocation3 [shape = 'u8[65536]{0}', space=vmem, size = 0x10000, scoped, tag = 'input window, operand 0']
    loop: start=0, step=1, limit=6
    $region2: #{tpu_custom_call.1} parent=1 // loop_pre_header
      _
    $region3: #{tpu_custom_call.1} parent=1 // loop_header
      %s12 = sphi 0, %s16
      %p13 = scmp.ge.s32.totalorder %s12, 6
      %s19 = sphi 0, %s31
      %s20 = sphi 0, %s27
      %s21 = sphi 0, %s19
      %s22 = sphi 0, %s20
      %s23 = sphi 0, %s21
      %s24 = sphi 0, %s22
      %s36 = sphi 0, %s38
      %s39 = sphi 0, %s36
      %s40 = sphi 0, %s39
      %s56 = sphi 0, %s40
      %s62 = sphi 0, %s64
      %s65 = sphi 0, %s62
      %s66 = sphi 0, %s65
      %s82 = sphi 0, %s66
      %s88 = sphi 0, %s90
      %s91 = sphi 0, %s88
      %s92 = sphi 0, %s91
      %s108 = sphi 0, %s92
      %s112 = sphi 0, %s112
      %s114 = sphi 0, %s112
      %s115 = sphi 0, %s114
      %s129 = sphi 0, %s115
      %s133 = sphi 0, %s133
      %s135 = sphi 0, %s133
      %s136 = sphi 0, %s135
      %s150 = sphi 0, %s136
      %s154 = sphi 0, %s154
      %s156 = sphi 0, %s154
      %s157 = sphi 0, %s156
      %s171 = sphi 0, %s157
      %s177 = sphi 0, %s179
      %s180 = sphi 0, %s177
      %s181 = sphi 0, %s180
      %s197 = sphi 0, %s181
    $region4: #{tpu_custom_call.1} parent=1 // loop_header_branch
      %15 = sbr.rel (%p13) target = $region8
    $region5: #{tpu_custom_call.1} parent=1 // loop_body
      %s17 = ssub.s32 %s12, 1
      %s18 = ssub.s32 %s12, 2
      %s25 = sadd.s32 1, %s20
      %p26 = scmp.ge.s32.totalorder %s25, 2
      %s27 = scalar_select %p26, 0, %s25
      %s28 = sadd.s32 1, %s19
      %s29 = scalar_select %p26, %s28, %s19
      %p30 = scmp.ge.s32.totalorder %s29, 2
      %s31 = scalar_select %p30, 0, %s29
      %s32 = ssub.s32 %s19, %s31
      %s33 = ssub.s32 %s20, %s27
      %s34 = sor.u32 %s32, %s33
      %p35 = scmp.eq.s32.totalorder %s34, 0
      %s37 = sadd.s32 %s36, 1
      %s38 = scalar_select %p35, %s36, %s37
      %p41 = pneg %p35
      %p42 = scmp.eq.s32.totalorder %s12, 3
      %p43 = por %p41, %p42
      %p44 = scmp.ne.s32.totalorder %s36, %s39
      %p45 = scmp.eq.s32.totalorder %s12, 0
      %p46 = por %p44, %p45
      %p47 = scmp.ne.s32.totalorder %s36, %s39
      %p48 = scmp.eq.s32.totalorder %s17, 3
      %p49 = por %p47, %p48
      %p50 = scmp.ne.s32.totalorder %s39, %s40
      %p51 = scmp.eq.s32.totalorder %s17, 0
      %p52 = por %p50, %p51
      %p53 = scmp.ne.s32.totalorder %s39, %s40
      %p54 = scmp.eq.s32.totalorder %s18, 3
      %p55 = por %p53, %p54
      %p57 = scmp.ne.s32.totalorder %s40, %s56
      %p58 = scmp.eq.s32.totalorder %s18, 0
      %p59 = por %p57, %p58
      %s60 = ssub.s32 %s20, %s27
      %p61 = scmp.eq.s32.totalorder %s60, 0
      %s63 = sadd.s32 %s62, 1
      %s64 = scalar_select %p61, %s62, %s63
      %p67 = pneg %p61
      %p68 = scmp.eq.s32.totalorder %s12, 3
      %p69 = por %p67, %p68
      %p70 = scmp.ne.s32.totalorder %s62, %s65
      %p71 = scmp.eq.s32.totalorder %s12, 0
      %p72 = por %p70, %p71
      %p73 = scmp.ne.s32.totalorder %s62, %s65
      %p74 = scmp.eq.s32.totalorder %s17, 3
      %p75 = por %p73, %p74
      %p76 = scmp.ne.s32.totalorder %s65, %s66
      %p77 = scmp.eq.s32.totalorder %s17, 0
      %p78 = por %p76, %p77
      %p79 = scmp.ne.s32.totalorder %s65, %s66
      %p80 = scmp.eq.s32.totalorder %s18, 3
      %p81 = por %p79, %p80
      %p83 = scmp.ne.s32.totalorder %s66, %s82
      %p84 = scmp.eq.s32.totalorder %s18, 0
      %p85 = por %p83, %p84
      %s86 = ssub.s32 %s19, %s31
      %p87 = scmp.eq.s32.totalorder %s86, 0
      %s89 = sadd.s32 %s88, 1
      %s90 = scalar_select %p87, %s88, %s89
      %p93 = pneg %p87
      %p94 = scmp.eq.s32.totalorder %s12, 3
      %p95 = por %p93, %p94
      %p96 = scmp.ne.s32.totalorder %s88, %s91
      %p97 = scmp.eq.s32.totalorder %s12, 0
      %p98 = por %p96, %p97
      %p99 = scmp.ne.s32.totalorder %s88, %s91
      %p100 = scmp.eq.s32.totalorder %s17, 3
      %p101 = por %p99, %p100
      %p102 = scmp.ne.s32.totalorder %s91, %s92
      %p103 = scmp.eq.s32.totalorder %s17, 0
      %p104 = por %p102, %p103
      %p105 = scmp.ne.s32.totalorder %s91, %s92
      %p106 = scmp.eq.s32.totalorder %s18, 3
      %p107 = por %p105, %p106
      %p109 = scmp.ne.s32.totalorder %s92, %s108
      %p110 = scmp.eq.s32.totalorder %s18, 0
      %p111 = por %p109, %p110
      %s113 = sadd.s32 %s112, 1
      %p116 = scmp.eq.s32.totalorder %s12, 3
      %p117 = scmp.ne.s32.totalorder %s112, %s114
      %p118 = scmp.eq.s32.totalorder %s12, 0
      %p119 = por %p117, %p118
      %p120 = scmp.ne.s32.totalorder %s112, %s114
      %p121 = scmp.eq.s32.totalorder %s17, 3
      %p122 = por %p120, %p121
      %p123 = scmp.ne.s32.totalorder %s114, %s115
      %p124 = scmp.eq.s32.totalorder %s17, 0
      %p125 = por %p123, %p124
      %p126 = scmp.ne.s32.totalorder %s114, %s115
      %p127 = scmp.eq.s32.totalorder %s18, 3
      %p128 = por %p126, %p127
      %p130 = scmp.ne.s32.totalorder %s115, %s129
      %p131 = scmp.eq.s32.totalorder %s18, 0
      %p132 = por %p130, %p131
      %s134 = sadd.s32 %s133, 1
      %p137 = scmp.eq.s32.totalorder %s12, 3
      %p138 = scmp.ne.s32.totalorder %s133, %s135
      %p139 = scmp.eq.s32.totalorder %s12, 0
      %p140 = por %p138, %p139
      %p141 = scmp.ne.s32.totalorder %s133, %s135
      %p142 = scmp.eq.s32.totalorder %s17, 3
      %p143 = por %p141, %p142
      %p144 = scmp.ne.s32.totalorder %s135, %s136
      %p145 = scmp.eq.s32.totalorder %s17, 0
      %p146 = por %p144, %p145
      %p147 = scmp.ne.s32.totalorder %s135, %s136
      %p148 = scmp.eq.s32.totalorder %s18, 3
      %p149 = por %p147, %p148
      %p151 = scmp.ne.s32.totalorder %s136, %s150
      %p152 = scmp.eq.s32.totalorder %s18, 0
      %p153 = por %p151, %p152
      %s155 = sadd.s32 %s154, 1
      %p158 = scmp.eq.s32.totalorder %s12, 3
      %p159 = scmp.ne.s32.totalorder %s154, %s156
      %p160 = scmp.eq.s32.totalorder %s12, 0
      %p161 = por %p159, %p160
      %p162 = scmp.ne.s32.totalorder %s154, %s156
      %p163 = scmp.eq.s32.totalorder %s17, 3
      %p164 = por %p162, %p163
      %p165 = scmp.ne.s32.totalorder %s156, %s157
      %p166 = scmp.eq.s32.totalorder %s17, 0
      %p167 = por %p165, %p166
      %p168 = scmp.ne.s32.totalorder %s156, %s157
      %p169 = scmp.eq.s32.totalorder %s18, 3
      %p170 = por %p168, %p169
      %p172 = scmp.ne.s32.totalorder %s157, %s171
      %p173 = scmp.eq.s32.totalorder %s18, 0
      %p174 = por %p172, %p173
      %s175 = ssub.s32 %s19, %s31
      %p176 = scmp.eq.s32.totalorder %s175, 0
      %s178 = sadd.s32 %s177, 1
      %s179 = scalar_select %p176, %s177, %s178
      %p182 = pneg %p176
      %p183 = scmp.eq.s32.totalorder %s12, 3
      %p184 = por %p182, %p183
      %p185 = scmp.ne.s32.totalorder %s177, %s180
      %p186 = scmp.eq.s32.totalorder %s12, 0
      %p187 = por %p185, %p186
      %p188 = scmp.ne.s32.totalorder %s177, %s180
      %p189 = scmp.eq.s32.totalorder %s17, 3
      %p190 = por %p188, %p189
      %p191 = scmp.ne.s32.totalorder %s180, %s181
      %p192 = scmp.eq.s32.totalorder %s17, 0
      %p193 = por %p191, %p192
      %p194 = scmp.ne.s32.totalorder %s180, %s181
      %p195 = scmp.eq.s32.totalorder %s18, 3
      %p196 = por %p194, %p195
      %p198 = scmp.ne.s32.totalorder %s181, %s197
      %p199 = scmp.eq.s32.totalorder %s18, 0
      %p200 = por %p198, %p199
      %p201 = scmp.le.s32.totalorder 1, %s12
      %p202 = scmp.lt.s32.totalorder %s12, 5
      %p203 = pnand %p201, %p202
      %p204 = pneg %p203
      // Predicated region
      $region9: #{tpu_custom_call.1} parent=5 // pred_check
        _
      $region10: #{tpu_custom_call.1} parent=5 // pred_check_branch
        %206 = sbr.rel (%p203) target = $region12
      $region11: #{tpu_custom_call.1} parent=5 // pred_region
        %s207 = ssub.s32 %s12, 1
        // Predicated region
        $region13: #{tpu_custom_call.1} parent=11 // pred_check
          %p208 = pneg %p125
        $region14: #{tpu_custom_call.1} parent=11 // pred_check_branch
          %210 = sbr.rel (%p208) target = $region16
        $region15: #{tpu_custom_call.1} parent=11 // pred_region
          _
        $region16: #{tpu_custom_call.1} parent=11 // pred_fallthru
          _
        // Predicated region
        $region17: #{tpu_custom_call.1} parent=11 // pred_check
          %p211 = pneg %p146
        $region18: #{tpu_custom_call.1} parent=11 // pred_check_branch
          %213 = sbr.rel (%p211) target = $region20
        $region19: #{tpu_custom_call.1} parent=11 // pred_region
          _
        $region20: #{tpu_custom_call.1} parent=11 // pred_fallthru
          _
        // Predicated region
        $region21: #{tpu_custom_call.1} parent=11 // pred_check
          %p214 = pneg %p167
        $region22: #{tpu_custom_call.1} parent=11 // pred_check_branch
          %216 = sbr.rel (%p214) target = $region24
        $region23: #{tpu_custom_call.1} parent=11 // pred_region
          _
        $region24: #{tpu_custom_call.1} parent=11 // pred_fallthru
          _
      $region12: #{tpu_custom_call.1} parent=5 // pred_fallthru
        _
      %p217 = scmp.lt.s32.totalorder %s12, 4
      // Predicated region
      $region25: #{tpu_custom_call.1} parent=5 // pred_check
        %p218 = pneg %p217
      $region26: #{tpu_custom_call.1} parent=5 // pred_check_branch
        %220 = sbr.rel (%p218) target = $region28
      $region27: #{tpu_custom_call.1} parent=5 // pred_region
        // Predicated region
        $region29: #{tpu_custom_call.1} parent=27 // pred_check
          %p221 = pneg %p46
        $region30: #{tpu_custom_call.1} parent=27 // pred_check_branch
          %223 = sbr.rel (%p221) target = $region32
        $region31: #{tpu_custom_call.1} parent=27 // pred_region
          %s224 = sand.u32 %s36, 1
          %s225 = sand.u32 %s36, 1
          %s226 = smul.addr %s225, 64
          %s227 = scalar_lea.vmem [#allocation3], %s226
          %s228 = smul.u32 16, %s19
          %s229 = smul.addr %s228, 2
          %s230 = sadd.s32 %s20, %s229
          %s231 = smul.addr %s230, 4
          %s232 = scalar_lea.vmem %s0, %s231
          // Predicated region
          $region33: #{tpu_custom_call.1} parent=31 // pred_check
            _
          $region34: #{tpu_custom_call.1} parent=31 // pred_check_branch
            %234 = sbr.rel (0) target = $region36
          $region35: #{tpu_custom_call.1} parent=31 // pred_region
            // Predicated region
            $region37: #{tpu_custom_call.1} parent=35 // pred_check
              _
            $region38: #{tpu_custom_call.1} parent=35 // pred_check_branch
              %236 = sbr.rel target = $region40
            $region39: #{tpu_custom_call.1} parent=35 // pred_region
              // Predicated region
              $region52: #{tpu_custom_call.1} parent=39 // pred_check
                _
              $region53: #{tpu_custom_call.1} parent=39 // pred_check_branch
                %281 = sbr.rel (0) target = $region55
              $region54: #{tpu_custom_call.1} parent=39 // pred_region
                loop: start=0, step=1, limit=1
                $region56: #{tpu_custom_call.1} parent=54 // loop_pre_header
                  _
                $region57: #{tpu_custom_call.1} parent=54 // loop_header
                  %s283 = sphi 0, %s287
                  %p284 = scmp.ge.s32.totalorder %s283, 1
                  %s288 = sphi %s232, %s232
                  %s289 = sphi %s227, %s227
                $region58: #{tpu_custom_call.1} parent=54 // loop_header_branch
                  %286 = sbr.rel (%p284) target = $region62
                $region59: #{tpu_custom_call.1} parent=54 // loop_body
                  _
                $region60: #{tpu_custom_call.1} parent=54 // loop_footer
                  %s287 = sadd.s32 1, %s283
                $region61: #{tpu_custom_call.1} parent=54 // loop_footer_branch
                  %282 = sbr.rel target = $region57
                $region62: #{tpu_custom_call.1} parent=54 // loop_exit
                  _
                loop: start=0, step=1, limit=1
                $region63: #{tpu_custom_call.1} parent=54 // loop_pre_header
                  _
                $region64: #{tpu_custom_call.1} parent=54 // loop_header
                  %s292 = sphi 0, %s296
                  %p293 = scmp.ge.s32.totalorder %s292, 1
                  %s297 = sphi %s232, %s232
                  %s298 = sphi %s227, %s227
                $region65: #{tpu_custom_call.1} parent=54 // loop_header_branch
                  %295 = sbr.rel (%p293) target = $region69
                $region66: #{tpu_custom_call.1} parent=54 // loop_body
                  %v299 = vld [vmem:[%s297] sm:$0xf]
                  %300 = vst [vmem:[%s298] sm:$0xf] %v299
                  %v301 = vld [vmem:[%s297 + $0x8] sm:$0xf]
                  %302 = vst [vmem:[%s298 + $0x4] sm:$0xf] %v301
                  %v303 = vld [vmem:[%s297 + $0x10] sm:$0xf]
                  %304 = vst [vmem:[%s298 + $0x8] sm:$0xf] %v303
                  %v305 = vld [vmem:[%s297 + $0x18] sm:$0xf]
                  %306 = vst [vmem:[%s298 + $0xc] sm:$0xf] %v305
                  %v307 = vld [vmem:[%s297 + $0x20] sm:$0xf]
                  %308 = vst [vmem:[%s298 + $0x10] sm:$0xf] %v307
                  %v309 = vld [vmem:[%s297 + $0x28] sm:$0xf]
                  %310 = vst [vmem:[%s298 + $0x14] sm:$0xf] %v309
                  %v311 = vld [vmem:[%s297 + $0x30] sm:$0xf]
                  %312 = vst [vmem:[%s298 + $0x18] sm:$0xf] %v311
                  %v313 = vld [vmem:[%s297 + $0x38] sm:$0xf]
                  %314 = vst [vmem:[%s298 + $0x1c] sm:$0xf] %v313
                  %v315 = vld [vmem:[%s297 + $0x40] sm:$0xf]
                  %316 = vst [vmem:[%s298 + $0x20] sm:$0xf] %v315
                  %v317 = vld [vmem:[%s297 + $0x48] sm:$0xf]
                  %318 = vst [vmem:[%s298 + $0x24] sm:$0xf] %v317
                  %v319 = vld [vmem:[%s297 + $0x50] sm:$0xf]
                  %320 = vst [vmem:[%s298 + $0x28] sm:$0xf] %v319
                  %v321 = vld [vmem:[%s297 + $0x58] sm:$0xf]
                  %322 = vst [vmem:[%s298 + $0x2c] sm:$0xf] %v321
                  %v323 = vld [vmem:[%s297 + $0x60] sm:$0xf]
                  %324 = vst [vmem:[%s298 + $0x30] sm:$0xf] %v323
                  %v325 = vld [vmem:[%s297 + $0x68] sm:$0xf]
                  %326 = vst [vmem:[%s298 + $0x34] sm:$0xf] %v325
                  %v327 = vld [vmem:[%s297 + $0x70] sm:$0xf]
                  %328 = vst [vmem:[%s298 + $0x38] sm:$0xf] %v327
                  %v329 = vld [vmem:[%s297 + $0x78] sm:$0xf]
                  %330 = vst [vmem:[%s298 + $0x3c] sm:$0xf] %v329
                $region67: #{tpu_custom_call.1} parent=54 // loop_footer
                  %s296 = sadd.s32 1, %s292
                $region68: #{tpu_custom_call.1} parent=54 // loop_footer_branch
                  %291 = sbr.rel target = $region64
                $region69: #{tpu_custom_call.1} parent=54 // loop_exit
                  _
              $region55: #{tpu_custom_call.1} parent=39 // pred_fallthru
                _
            $region40: #{tpu_custom_call.1} parent=35 // pred_fallthru
              _
            // Predicated region
            $region41: #{tpu_custom_call.1} parent=35 // pred_check
              _
            $region42: #{tpu_custom_call.1} parent=35 // pred_check_branch
              %238 = sbr.rel (0) target = $region44
            $region43: #{tpu_custom_call.1} parent=35 // pred_region
              loop: start=0, step=1, limit=1
              $region45: #{tpu_custom_call.1} parent=43 // loop_pre_header
                _
              $region46: #{tpu_custom_call.1} parent=43 // loop_header
                %s241 = sphi 0, %s245
                %p242 = scmp.ge.s32.totalorder %s241, 1
                %s246 = sphi %s232, %s232
                %s247 = sphi %s227, %s227
              $region47: #{tpu_custom_call.1} parent=43 // loop_header_branch
                %244 = sbr.rel (%p242) target = $region51
              $region48: #{tpu_custom_call.1} parent=43 // loop_body
                %v248 = vld [vmem:[%s246] sm:$0xf]
                %249 = vst [vmem:[%s247] sm:$0xf] %v248
                %v250 = vld [vmem:[%s246 + $0x8] sm:$0xf]
                %251 = vst [vmem:[%s247 + $0x4] sm:$0xf] %v250
                %v252 = vld [vmem:[%s246 + $0x10] sm:$0xf]
                %253 = vst [vmem:[%s247 + $0x8] sm:$0xf] %v252
                %v254 = vld [vmem:[%s246 + $0x18] sm:$0xf]
                %255 = vst [vmem:[%s247 + $0xc] sm:$0xf] %v254
                %v256 = vld [vmem:[%s246 + $0x20] sm:$0xf]
                %257 = vst [vmem:[%s247 + $0x10] sm:$0xf] %v256
                %v258 = vld [vmem:[%s246 + $0x28] sm:$0xf]
                %259 = vst [vmem:[%s247 + $0x14] sm:$0xf] %v258
                %v260 = vld [vmem:[%s246 + $0x30] sm:$0xf]
                %261 = vst [vmem:[%s247 + $0x18] sm:$0xf] %v260
                %v262 = vld [vmem:[%s246 + $0x38] sm:$0xf]
                %263 = vst [vmem:[%s247 + $0x1c] sm:$0xf] %v262
                %v264 = vld [vmem:[%s246 + $0x40] sm:$0xf]
                %265 = vst [vmem:[%s247 + $0x20] sm:$0xf] %v264
                %v266 = vld [vmem:[%s246 + $0x48] sm:$0xf]
                %267 = vst [vmem:[%s247 + $0x24] sm:$0xf] %v266
                %v268 = vld [vmem:[%s246 + $0x50] sm:$0xf]
                %269 = vst [vmem:[%s247 + $0x28] sm:$0xf] %v268
                %v270 = vld [vmem:[%s246 + $0x58] sm:$0xf]
                %271 = vst [vmem:[%s247 + $0x2c] sm:$0xf] %v270
                %v272 = vld [vmem:[%s246 + $0x60] sm:$0xf]
                %273 = vst [vmem:[%s247 + $0x30] sm:$0xf] %v272
                %v274 = vld [vmem:[%s246 + $0x68] sm:$0xf]
                %275 = vst [vmem:[%s247 + $0x34] sm:$0xf] %v274
                %v276 = vld [vmem:[%s246 + $0x70] sm:$0xf]
                %277 = vst [vmem:[%s247 + $0x38] sm:$0xf] %v276
                %v278 = vld [vmem:[%s246 + $0x78] sm:$0xf]
                %279 = vst [vmem:[%s247 + $0x3c] sm:$0xf] %v278
              $region49: #{tpu_custom_call.1} parent=43 // loop_footer
                %s245 = sadd.s32 1, %s241
              $region50: #{tpu_custom_call.1} parent=43 // loop_footer_branch
                %240 = sbr.rel target = $region46
              $region51: #{tpu_custom_call.1} parent=43 // loop_exit
                _
            $region44: #{tpu_custom_call.1} parent=35 // pred_fallthru
              _
          $region36: #{tpu_custom_call.1} parent=31 // pred_fallthru
            _
          %331 = vnop
        $region32: #{tpu_custom_call.1} parent=27 // pred_fallthru
          _
        // Predicated region
        $region70: #{tpu_custom_call.1} parent=27 // pred_check
          %p332 = pneg %p72
        $region71: #{tpu_custom_call.1} parent=27 // pred_check_branch
          %334 = sbr.rel (%p332) target = $region73
        $region72: #{tpu_custom_call.1} parent=27 // pred_region
          %s335 = smul.u32 16, %s20
          %p336 = scmp.lt.s32.totalorder %s335, 31
          %s337 = scalar_select %p336, %s335, 31
          %s338 = smul.addr %s337, 4
          %s339 = scalar_lea.vmem %s1, %s338
          %s340 = smul.u32 16, %s20
        $region73: #{tpu_custom_call.1} parent=27 // pred_fallthru
          _
        // Predicated region
        $region74: #{tpu_custom_call.1} parent=27 // pred_check
          %p341 = pneg %p98
        $region75: #{tpu_custom_call.1} parent=27 // pred_check_branch
          %343 = sbr.rel (%p341) target = $region77
        $region76: #{tpu_custom_call.1} parent=27 // pred_region
          %s344 = smul.u32 16, %s19
          %p345 = scmp.lt.s32.totalorder %s344, 31
          %s346 = scalar_select %p345, %s344, 31
          %s347 = smul.addr %s346, 8
          %s348 = scalar_lea.vmem %s2, %s347
          %s349 = smul.u32 16, %s19
        $region77: #{tpu_custom_call.1} parent=27 // pred_fallthru
          _
      $region28: #{tpu_custom_call.1} parent=5 // pred_fallthru
        _
      %p350 = scmp.le.s32.totalorder 1, %s12
      %p351 = scmp.lt.s32.totalorder %s12, 5
      %p352 = pnand %p350, %p351
      %p353 = pneg %p352
      // Predicated region
      $region78: #{tpu_custom_call.1} parent=5 // pred_check
        _
      $region79: #{tpu_custom_call.1} parent=5 // pred_check_branch
        %355 = sbr.rel (%p352) target = $region81
      $region80: #{tpu_custom_call.1} parent=5 // pred_region
        %s356 = ssub.s32 %s12, 1
        %s357 = sand.u32 %s39, 1
        %s358 = sand.u32 %s39, 1
        %s359 = smul.addr %s358, 64
        %s360 = scalar_lea.vmem [#allocation3], %s359
        // Predicated region
        $region82: #{tpu_custom_call.1} parent=80 // pred_check
          %p361 = pneg %p52
        $region83: #{tpu_custom_call.1} parent=80 // pred_check_branch
          %363 = sbr.rel (%p361) target = $region85
        $region84: #{tpu_custom_call.1} parent=80 // pred_region
          _
        $region85: #{tpu_custom_call.1} parent=80 // pred_fallthru
          _
        %s364 = sand.u32 %s39, 1
        %s365 = sand.u32 %s39, 1
        %s366 = smul.addr %s365, 64
        %s367 = scalar_lea.vmem [#allocation3], %s366
        %p368 = pneg %p52
        %p369 = pneg %p49
        %s370 = smul.u32 16, %s22
        %p371 = scmp.lt.s32.totalorder %s370, 31
        %s372 = scalar_select %p371, %s370, 31
        %s373 = smul.addr %s372, 4
        %s374 = scalar_lea.vmem %s1, %s373
        %p375 = pneg %p78
        %p376 = pneg %p75
        %s377 = smul.u32 16, %s21
        %p378 = scmp.lt.s32.totalorder %s377, 31
        %s379 = scalar_select %p378, %s377, 31
        %s380 = smul.addr %s379, 8
        %s381 = scalar_lea.vmem %s2, %s380
        %p382 = pneg %p104
        %p383 = pneg %p101
        %p384 = pneg %p125
        %p385 = pneg %p122
        %p386 = pneg %p146
        %p387 = pneg %p143
        %p388 = pneg %p167
        %p389 = pneg %p164
        %p390 = pneg %p193
        %p391 = pneg %p190
        %s392 = smul.u32 16, %s21
        %p393 = scmp.lt.s32.totalorder %s392, 31
        %s394 = scalar_select %p393, %s392, 31
        %s395 = smul.addr %s394, 4
        %s396 = scalar_lea.vmem %s6, %s395
        %s397 = smul.u32 16, %s21
        %s398 = smul.u32 16, %s22
        %p399 = scmp.lt.s32.totalorder %s398, 31
        %s400 = scalar_select %p399, %s398, 31
        %s401 = smul.addr %s400, 4
        %s402 = scalar_lea.vmem %s1, %s401
        %s403 = smul.u32 16, %s22
        %s404 = smul.u32 16, %s21
        %p405 = scmp.lt.s32.totalorder %s404, 31
        %s406 = scalar_select %p405, %s404, 31
        %s407 = smul.addr %s406, 8
        %s408 = scalar_lea.vmem %s2, %s407
        %s409 = smul.u32 16, %s21
        %s410 = smul.u32 16, %s21
        %p411 = scmp.lt.s32.totalorder %s410, 31
        %s412 = scalar_select %p411, %s410, 31
        %s413 = smul.addr %s412, 4
        %s414 = scalar_lea.vmem %s6, %s413
        %s415 = smul.u32 16, %s21
        %p417 = scmp.eq.s32.totalorder %s22, 0
        // Predicated region
        $region86: #{tpu_custom_call.1} parent=80 // pred_check
          %p418 = pneg %p417
        $region87: #{tpu_custom_call.1} parent=80 // pred_check_branch
          %420 = sbr.rel (%p418) target = $region89
        $region88: #{tpu_custom_call.1} parent=80 // pred_region
          %vm421 = vcmask 785408
          %422 = vst.msk [vmem:[#allocation2] sm:$0xff] %vm421, 0.0
          %423 = vst.msk [vmem:[#allocation2 + $0x8] sm:$0xff] %vm421, 0.0
          %424 = vst.msk [vmem:[#allocation2 + $0x10] sm:$0xff] %vm421, 0.0
          %425 = vst.msk [vmem:[#allocation2 + $0x18] sm:$0xff] %vm421, 0.0
          %426 = vst.msk [vmem:[#allocation2 + $0x20] sm:$0xff] %vm421, 0.0
          %427 = vst.msk [vmem:[#allocation2 + $0x28] sm:$0xff] %vm421, 0.0
          %428 = vst.msk [vmem:[#allocation2 + $0x30] sm:$0xff] %vm421, 0.0
          %429 = vst.msk [vmem:[#allocation2 + $0x38] sm:$0xff] %vm421, 0.0
          %430 = vst.msk [vmem:[#allocation2 + $0x40] sm:$0xff] %vm421, 0.0
          %431 = vst.msk [vmem:[#allocation2 + $0x48] sm:$0xff] %vm421, 0.0
          %432 = vst.msk [vmem:[#allocation2 + $0x50] sm:$0xff] %vm421, 0.0
          %433 = vst.msk [vmem:[#allocation2 + $0x58] sm:$0xff] %vm421, 0.0
          %434 = vst.msk [vmem:[#allocation2 + $0x60] sm:$0xff] %vm421, 0.0
          %435 = vst.msk [vmem:[#allocation2 + $0x68] sm:$0xff] %vm421, 0.0
          %436 = vst.msk [vmem:[#allocation2 + $0x70] sm:$0xff] %vm421, 0.0
          %437 = vst.msk [vmem:[#allocation2 + $0x78] sm:$0xff] %vm421, 0.0
        $region89: #{tpu_custom_call.1} parent=80 // pred_fallthru
          _
        %v438 = vld [vmem:[#allocation2] sm:$0xff]
        %v439 = vld [vmem:[#allocation2 + $0x8] sm:$0xff]
        %v440 = vld [vmem:[#allocation2 + $0x10] sm:$0xff]
        %v441 = vld [vmem:[#allocation2 + $0x18] sm:$0xff]
        %v442 = vld [vmem:[#allocation2 + $0x20] sm:$0xff]
        %v443 = vld [vmem:[#allocation2 + $0x28] sm:$0xff]
        %v444 = vld [vmem:[#allocation2 + $0x30] sm:$0xff]
        %v445 = vld [vmem:[#allocation2 + $0x38] sm:$0xff]
        %v446 = vld [vmem:[#allocation2 + $0x40] sm:$0xff]
        %v447 = vld [vmem:[#allocation2 + $0x48] sm:$0xff]
        %v448 = vld [vmem:[#allocation2 + $0x50] sm:$0xff]
        %v449 = vld [vmem:[#allocation2 + $0x58] sm:$0xff]
        %v450 = vld [vmem:[#allocation2 + $0x60] sm:$0xff]
        %v451 = vld [vmem:[#allocation2 + $0x68] sm:$0xff]
        %v452 = vld [vmem:[#allocation2 + $0x70] sm:$0xff]
        %v453 = vld [vmem:[#allocation2 + $0x78] sm:$0xff]
        %v454 = vld [vmem:[%s360] sm:$0xf]
        %v455 = vld [vmem:[%s360 + $0x4] sm:$0xf]
        %v456 = vld [vmem:[%s360 + $0x8] sm:$0xf]
        %v457 = vld [vmem:[%s360 + $0xc] sm:$0xf]
        %v458 = vld [vmem:[%s360 + $0x10] sm:$0xf]
        %v459 = vld [vmem:[%s360 + $0x14] sm:$0xf]
        %v460 = vld [vmem:[%s360 + $0x18] sm:$0xf]
        %v461 = vld [vmem:[%s360 + $0x1c] sm:$0xf]
        %v462 = vld [vmem:[%s360 + $0x20] sm:$0xf]
        %v463 = vld [vmem:[%s360 + $0x24] sm:$0xf]
        %v464 = vld [vmem:[%s360 + $0x28] sm:$0xf]
        %v465 = vld [vmem:[%s360 + $0x2c] sm:$0xf]
        %v466 = vld [vmem:[%s360 + $0x30] sm:$0xf]
        %v467 = vld [vmem:[%s360 + $0x34] sm:$0xf]
        %v468 = vld [vmem:[%s360 + $0x38] sm:$0xf]
        %v469 = vld [vmem:[%s360 + $0x3c] sm:$0xf]
        %v470 = vld [vmem:[%s402] sm:$0xf]
        %v471 = vld [vmem:[%s402 + $0x4] sm:$0xf]
        %v472 = vld [vmem:[%s402 + $0x8] sm:$0xf]
        %v473 = vld [vmem:[%s402 + $0xc] sm:$0xf]
        %v474 = vld [vmem:[%s402 + $0x10] sm:$0xf]
        %v475 = vld [vmem:[%s402 + $0x14] sm:$0xf]
        %v476 = vld [vmem:[%s402 + $0x18] sm:$0xf]
        %v477 = vld [vmem:[%s402 + $0x1c] sm:$0xf]
        %v478 = vld [vmem:[%s402 + $0x20] sm:$0xf]
        %v479 = vld [vmem:[%s402 + $0x24] sm:$0xf]
        %v480 = vld [vmem:[%s402 + $0x28] sm:$0xf]
        %v481 = vld [vmem:[%s402 + $0x2c] sm:$0xf]
        %v482 = vld [vmem:[%s402 + $0x30] sm:$0xf]
        %v483 = vld [vmem:[%s402 + $0x34] sm:$0xf]
        %v484 = vld [vmem:[%s402 + $0x38] sm:$0xf]
        %v485 = vld [vmem:[%s402 + $0x3c] sm:$0xf]
        %v502 = vunpack.c.l.b16 %v454
        %v503 = vunpack.c.l.b16 %v455
        %v504 = vunpack.c.l.b16 %v456
        %v505 = vunpack.c.l.b16 %v457
        %v506 = vunpack.c.l.b16 %v458
        %v507 = vunpack.c.l.b16 %v459
        %v508 = vunpack.c.l.b16 %v460
        %v509 = vunpack.c.l.b16 %v461
        %v510 = vunpack.c.l.b16 %v462
        %v511 = vunpack.c.l.b16 %v463
        %v512 = vunpack.c.l.b16 %v464
        %v513 = vunpack.c.l.b16 %v465
        %v514 = vunpack.c.l.b16 %v466
        %v515 = vunpack.c.l.b16 %v467
        %v516 = vunpack.c.l.b16 %v468
        %v517 = vunpack.c.l.b16 %v469
        %v518 = vpack.c.b16 %v503, %v502
        %v519 = vpack.c.b16 %v505, %v504
        %v520 = vpack.c.b16 %v507, %v506
        %v521 = vpack.c.b16 %v509, %v508
        %v522 = vpack.c.b16 %v511, %v510
        %v523 = vpack.c.b16 %v513, %v512
        %v524 = vpack.c.b16 %v515, %v514
        %v525 = vpack.c.b16 %v517, %v516
        %v550 = vunpack.c.l.b16 %v470
        %v551 = vunpack.c.l.b16 %v471
        %v552 = vunpack.c.l.b16 %v472
        %v553 = vunpack.c.l.b16 %v473
        %v554 = vunpack.c.l.b16 %v474
        %v555 = vunpack.c.l.b16 %v475
        %v556 = vunpack.c.l.b16 %v476
        %v557 = vunpack.c.l.b16 %v477
        %v558 = vunpack.c.l.b16 %v478
        %v559 = vunpack.c.l.b16 %v479
        %v560 = vunpack.c.l.b16 %v480
        %v561 = vunpack.c.l.b16 %v481
        %v562 = vunpack.c.l.b16 %v482
        %v563 = vunpack.c.l.b16 %v483
        %v564 = vunpack.c.l.b16 %v484
        %v565 = vunpack.c.l.b16 %v485
        %v566 = vpack.c.b16 %v551, %v550
        %v567 = vpack.c.b16 %v553, %v552
        %v568 = vpack.c.b16 %v555, %v554
        %v569 = vpack.c.b16 %v557, %v556
        %v570 = vpack.c.b16 %v559, %v558
        %v571 = vpack.c.b16 %v561, %v560
        %v572 = vpack.c.b16 %v563, %v562
        %v573 = vpack.c.b16 %v565, %v564
        %582 = vmatprep.subr.bf16.mxu0 0
        %583 = vmatpush1.bf16.msra.mxu0 %v566
        %584 = vmatprep.subr.bf16.mxu0 0
        %585 = vmatpush1.bf16.msra.mxu0 %v567
        %586 = vmatprep.subr.bf16.mxu0 0
        %587 = vmatpush1.bf16.msra.mxu0 %v568
        %588 = vmatprep.subr.bf16.mxu0 0
        %589 = vmatpush1.bf16.msra.mxu0 %v569
        %590 = vmatprep.subr.bf16.mxu0 0
        %591 = vmatpush1.bf16.msra.mxu0 %v570
        %592 = vmatprep.subr.bf16.mxu0 0
        %593 = vmatpush1.bf16.msra.mxu0 %v571
        %594 = vmatprep.subr.bf16.mxu0 0
        %595 = vmatpush1.bf16.msra.mxu0 %v572
        %596 = vmatprep.subr.bf16.mxu0 0
        %597 = vmatpush1.bf16.msra.mxu0 %v573
        %598 = vmatprep.subr.bf16.mxu0 0
        %599 = vmatpush1.bf16.msra.mxu0 0
        %600 = vmatprep.subr.bf16.mxu0 0
        %601 = vmatpush1.bf16.msra.mxu0 0
        %602 = vmatprep.subr.bf16.mxu0 0
        %603 = vmatpush1.bf16.msra.mxu0 0
        %604 = vmatprep.subr.bf16.mxu0 0
        %605 = vmatpush1.bf16.msra.mxu0 0
        %606 = vmatprep.subr.bf16.mxu0 0
        %607 = vmatpush1.bf16.msra.mxu0 0
        %608 = vmatprep.subr.bf16.mxu0 0
        %609 = vmatpush1.bf16.msra.mxu0 0
        %610 = vmatprep.subr.bf16.mxu0 0
        %611 = vmatpush1.bf16.msra.mxu0 0
        %612 = vmatprep.subr.bf16.mxu0 0
        %613 = vmatpush1.bf16.msra.mxu0 0
        %614 = vmatprep.mubr.bf16.mxu0 0
        %615 = vmatmul.mubr.bf16.gmra.mrb[0].mxu0 %v518
        %v616 = vpop.f32.mrb[0].mxu0
        %v617 = vadd.f32 0.0, %v616
        %v618 = vpop.f32.mrb[0].mxu0
        %v619 = vpop.f32.mrb[0].mxu0
        %v620 = vadd.f32 0.0, %v619
        %v621 = vpop.f32.mrb[0].mxu0
        %622 = vmatprep.mubr.bf16.mxu0 0
        %623 = vmatmul.mubr.bf16.gmra.mrb[0].mxu0 %v519
        %v624 = vpop.f32.mrb[0].mxu0
        %v625 = vadd.f32 0.0, %v624
        %v626 = vpop.f32.mrb[0].mxu0
        %v627 = vpop.f32.mrb[0].mxu0
        %v628 = vadd.f32 0.0, %v627
        %v629 = vpop.f32.mrb[0].mxu0
        %630 = vmatprep.mubr.bf16.mxu0 0
        %631 = vmatmul.mubr.bf16.gmra.mrb[0].mxu0 %v520
        %v632 = vpop.f32.mrb[0].mxu0
        %v633 = vadd.f32 0.0, %v632
        %v634 = vpop.f32.mrb[0].mxu0
        %v635 = vpop.f32.mrb[0].mxu0
        %v636 = vadd.f32 0.0, %v635
        %v637 = vpop.f32.mrb[0].mxu0
        %638 = vmatprep.mubr.bf16.mxu0 0
        %639 = vmatmul.mubr.bf16.gmra.mrb[0].mxu0 %v521
        %v640 = vpop.f32.mrb[0].mxu0
        %v641 = vadd.f32 0.0, %v640
        %v642 = vpop.f32.mrb[0].mxu0
        %v643 = vpop.f32.mrb[0].mxu0
        %v644 = vadd.f32 0.0, %v643
        %v645 = vpop.f32.mrb[0].mxu0
        %646 = vmatprep.mubr.bf16.mxu0 0
        %647 = vmatmul.mubr.bf16.gmra.mrb[0].mxu0 %v522
        %v648 = vpop.f32.mrb[0].mxu0
        %v649 = vadd.f32 0.0, %v648
        %v650 = vpop.f32.mrb[0].mxu0
        %v651 = vpop.f32.mrb[0].mxu0
        %v652 = vadd.f32 0.0, %v651
        %v653 = vpop.f32.mrb[0].mxu0
        %654 = vmatprep.mubr.bf16.mxu0 0
        %655 = vmatmul.mubr.bf16.gmra.mrb[0].mxu0 %v523
        %v656 = vpop.f32.mrb[0].mxu0
        %v657 = vadd.f32 0.0, %v656
        %v658 = vpop.f32.mrb[0].mxu0
        %v659 = vpop.f32.mrb[0].mxu0
        %v660 = vadd.f32 0.0, %v659
        %v661 = vpop.f32.mrb[0].mxu0
        %662 = vmatprep.mubr.bf16.mxu0 0
        %663 = vmatmul.mubr.bf16.gmra.mrb[0].mxu0 %v524
        %v664 = vpop.f32.mrb[0].mxu0
        %v665 = vadd.f32 0.0, %v664
        %v666 = vpop.f32.mrb[0].mxu0
        %v667 = vpop.f32.mrb[0].mxu0
        %v668 = vadd.f32 0.0, %v667
        %v669 = vpop.f32.mrb[0].mxu0
        %670 = vmatprep.mubr.bf16.mxu0 0
        %671 = vmatmul.mubr.bf16.gmra.mrb[0].mxu0 %v525
        %v672 = vpop.f32.mrb[0].mxu0
        %v673 = vadd.f32 0.0, %v672
        %v674 = vpop.f32.mrb[0].mxu0
        %v675 = vpop.f32.mrb[0].mxu0
        %v676 = vadd.f32 0.0, %v675
        %v677 = vpop.f32.mrb[0].mxu0
        %678 = vdwg.mxu0
        %v679 = vadd.f32 %v438, %v617
        %v680 = vadd.f32 %v439, %v620
        %v681 = vadd.f32 %v440, %v625
        %v682 = vadd.f32 %v441, %v628
        %v683 = vadd.f32 %v442, %v633
        %v684 = vadd.f32 %v443, %v636
        %v685 = vadd.f32 %v444, %v641
        %v686 = vadd.f32 %v445, %v644
        %v687 = vadd.f32 %v446, %v649
        %v688 = vadd.f32 %v447, %v652
        %v689 = vadd.f32 %v448, %v657
        %v690 = vadd.f32 %v449, %v660
        %v691 = vadd.f32 %v450, %v665
        %v692 = vadd.f32 %v451, %v668
        %v693 = vadd.f32 %v452, %v673
        %v694 = vadd.f32 %v453, %v676
        %vm695 = vcmask 785408
        %696 = vst.msk [vmem:[#allocation2] sm:$0xff] %vm695, %v679
        %697 = vst.msk [vmem:[#allocation2 + $0x8] sm:$0xff] %vm695, %v680
        %698 = vst.msk [vmem:[#allocation2 + $0x10] sm:$0xff] %vm695, %v681
        %699 = vst.msk [vmem:[#allocation2 + $0x18] sm:$0xff] %vm695, %v682
        %700 = vst.msk [vmem:[#allocation2 + $0x20] sm:$0xff] %vm695, %v683
        %701 = vst.msk [vmem:[#allocation2 + $0x28] sm:$0xff] %vm695, %v684
        %702 = vst.msk [vmem:[#allocation2 + $0x30] sm:$0xff] %vm695, %v685
        %703 = vst.msk [vmem:[#allocation2 + $0x38] sm:$0xff] %vm695, %v686
        %704 = vst.msk [vmem:[#allocation2 + $0x40] sm:$0xff] %vm695, %v687
        %705 = vst.msk [vmem:[#allocation2 + $0x48] sm:$0xff] %vm695, %v688
        %706 = vst.msk [vmem:[#allocation2 + $0x50] sm:$0xff] %vm695, %v689
        %707 = vst.msk [vmem:[#allocation2 + $0x58] sm:$0xff] %vm695, %v690
        %708 = vst.msk [vmem:[#allocation2 + $0x60] sm:$0xff] %vm695, %v691
        %709 = vst.msk [vmem:[#allocation2 + $0x68] sm:$0xff] %vm695, %v692
        %710 = vst.msk [vmem:[#allocation2 + $0x70] sm:$0xff] %vm695, %v693
        %711 = vst.msk [vmem:[#allocation2 + $0x78] sm:$0xff] %vm695, %v694
        %p712 = scmp.eq.s32.totalorder %s22, 1
        // Predicated region
        $region90: #{tpu_custom_call.1} parent=80 // pred_check
          %p713 = pneg %p712
        $region91: #{tpu_custom_call.1} parent=80 // pred_check_branch
          %715 = sbr.rel (%p713) target = $region93
        $region92: #{tpu_custom_call.1} parent=80 // pred_region
          %v716 = vld [vmem:[#allocation2] sm:$0xff]
          %v717 = vld [vmem:[#allocation2 + $0x8] sm:$0xff]
          %v718 = vld [vmem:[#allocation2 + $0x10] sm:$0xff]
          %v719 = vld [vmem:[#allocation2 + $0x18] sm:$0xff]
          %v720 = vld [vmem:[#allocation2 + $0x20] sm:$0xff]
          %v721 = vld [vmem:[#allocation2 + $0x28] sm:$0xff]
          %v722 = vld [vmem:[#allocation2 + $0x30] sm:$0xff]
          %v723 = vld [vmem:[#allocation2 + $0x38] sm:$0xff]
          %v724 = vld [vmem:[#allocation2 + $0x40] sm:$0xff]
          %v725 = vld [vmem:[#allocation2 + $0x48] sm:$0xff]
          %v726 = vld [vmem:[#allocation2 + $0x50] sm:$0xff]
          %v727 = vld [vmem:[#allocation2 + $0x58] sm:$0xff]
          %v728 = vld [vmem:[#allocation2 + $0x60] sm:$0xff]
          %v729 = vld [vmem:[#allocation2 + $0x68] sm:$0xff]
          %v730 = vld [vmem:[#allocation2 + $0x70] sm:$0xff]
          %v731 = vld [vmem:[#allocation2 + $0x78] sm:$0xff]
          %748 = vrot.lane.b32.xlu0 %v716, 96
          %v749 = vpop.permute.xlu0 %748
          %750 = vrot.lane.b32.xlu0 %v717, 96
          %v751 = vpop.permute.xlu0 %750
          %752 = vrot.lane.b32.xlu0 %v718, 96
          %v753 = vpop.permute.xlu0 %752
          %754 = vrot.lane.b32.xlu0 %v719, 96
          %v755 = vpop.permute.xlu0 %754
          %756 = vrot.lane.b32.xlu0 %v720, 96
          %v757 = vpop.permute.xlu0 %756
          %758 = vrot.lane.b32.xlu0 %v721, 96
          %v759 = vpop.permute.xlu0 %758
          %760 = vrot.lane.b32.xlu0 %v722, 96
          %v761 = vpop.permute.xlu0 %760
          %762 = vrot.lane.b32.xlu0 %v723, 96
          %v763 = vpop.permute.xlu0 %762
          %764 = vrot.lane.b32.xlu0 %v724, 96
          %v765 = vpop.permute.xlu0 %764
          %766 = vrot.lane.b32.xlu0 %v725, 96
          %v767 = vpop.permute.xlu0 %766
          %768 = vrot.lane.b32.xlu0 %v726, 96
          %v769 = vpop.permute.xlu0 %768
          %770 = vrot.lane.b32.xlu0 %v727, 96
          %v771 = vpop.permute.xlu0 %770
          %772 = vrot.lane.b32.xlu0 %v728, 96
          %v773 = vpop.permute.xlu0 %772
          %774 = vrot.lane.b32.xlu0 %v729, 96
          %v775 = vpop.permute.xlu0 %774
          %776 = vrot.lane.b32.xlu0 %v730, 96
          %v777 = vpop.permute.xlu0 %776
          %778 = vrot.lane.b32.xlu0 %v731, 96
          %v779 = vpop.permute.xlu0 %778
          %v796 = vmul.f32 %v716, %v749
          %v797 = vmul.f32 %v717, %v751
          %v798 = vmul.f32 %v718, %v753
          %v799 = vmul.f32 %v719, %v755
          %v800 = vmul.f32 %v720, %v757
          %v801 = vmul.f32 %v721, %v759
          %v802 = vmul.f32 %v722, %v761
          %v803 = vmul.f32 %v723, %v763
          %v804 = vmul.f32 %v724, %v765
          %v805 = vmul.f32 %v725, %v767
          %v806 = vmul.f32 %v726, %v769
          %v807 = vmul.f32 %v727, %v771
          %v808 = vmul.f32 %v728, %v773
          %v809 = vmul.f32 %v729, %v775
          %v810 = vmul.f32 %v730, %v777
          %v811 = vmul.f32 %v731, %v779
          %812 = vrot.lane.b32.xlu0 %v716, 64
          %v813 = vpop.permute.xlu0 %812
          %814 = vrot.lane.b32.xlu0 %v717, 64
          %v815 = vpop.permute.xlu0 %814
          %816 = vrot.lane.b32.xlu0 %v718, 64
          %v817 = vpop.permute.xlu0 %816
          %818 = vrot.lane.b32.xlu0 %v719, 64
          %v819 = vpop.permute.xlu0 %818
          %820 = vrot.lane.b32.xlu0 %v720, 64
          %v821 = vpop.permute.xlu0 %820
          %822 = vrot.lane.b32.xlu0 %v721, 64
          %v823 = vpop.permute.xlu0 %822
          %824 = vrot.lane.b32.xlu0 %v722, 64
          %v825 = vpop.permute.xlu0 %824
          %826 = vrot.lane.b32.xlu0 %v723, 64
          %v827 = vpop.permute.xlu0 %826
          %828 = vrot.lane.b32.xlu0 %v724, 64
          %v829 = vpop.permute.xlu0 %828
          %830 = vrot.lane.b32.xlu0 %v725, 64
          %v831 = vpop.permute.xlu0 %830
          %832 = vrot.lane.b32.xlu0 %v726, 64
          %v833 = vpop.permute.xlu0 %832
          %834 = vrot.lane.b32.xlu0 %v727, 64
          %v835 = vpop.permute.xlu0 %834
          %836 = vrot.lane.b32.xlu0 %v728, 64
          %v837 = vpop.permute.xlu0 %836
          %838 = vrot.lane.b32.xlu0 %v729, 64
          %v839 = vpop.permute.xlu0 %838
          %840 = vrot.lane.b32.xlu0 %v730, 64
          %v841 = vpop.permute.xlu0 %840
          %842 = vrot.lane.b32.xlu0 %v731, 64
          %v843 = vpop.permute.xlu0 %842
          %v860 = vmul.f32 %v716, %v813
          %v861 = vmul.f32 %v717, %v815
          %v862 = vmul.f32 %v718, %v817
          %v863 = vmul.f32 %v719, %v819
          %v864 = vmul.f32 %v720, %v821
          %v865 = vmul.f32 %v721, %v823
          %v866 = vmul.f32 %v722, %v825
          %v867 = vmul.f32 %v723, %v827
          %v868 = vmul.f32 %v724, %v829
          %v869 = vmul.f32 %v725, %v831
          %v870 = vmul.f32 %v726, %v833
          %v871 = vmul.f32 %v727, %v835
          %v872 = vmul.f32 %v728, %v837
          %v873 = vmul.f32 %v729, %v839
          %v874 = vmul.f32 %v730, %v841
          %v875 = vmul.f32 %v731, %v843
          %v876 = vmul.f32 %v796, %v813
          %v877 = vmul.f32 %v797, %v815
          %v878 = vmul.f32 %v798, %v817
          %v879 = vmul.f32 %v799, %v819
          %v880 = vmul.f32 %v800, %v821
          %v881 = vmul.f32 %v801, %v823
          %v882 = vmul.f32 %v802, %v825
          %v883 = vmul.f32 %v803, %v827
          %v884 = vmul.f32 %v804, %v829
          %v885 = vmul.f32 %v805, %v831
          %v886 = vmul.f32 %v806, %v833
          %v887 = vmul.f32 %v807, %v835
          %v888 = vmul.f32 %v808, %v837
          %v889 = vmul.f32 %v809, %v839
          %v890 = vmul.f32 %v810, %v841
          %v891 = vmul.f32 %v811, %v843
          %v892 = vpack.c.bf16 %v717, %v716
          %v893 = vpack.c.bf16 %v719, %v718
          %v894 = vpack.c.bf16 %v721, %v720
          %v895 = vpack.c.bf16 %v723, %v722
          %v896 = vpack.c.bf16 %v725, %v724
          %v897 = vpack.c.bf16 %v727, %v726
          %v898 = vpack.c.bf16 %v729, %v728
          %v899 = vpack.c.bf16 %v731, %v730
          %v900 = vld [vmem:[%s3] sm:$0xf]
          %v901 = vld [vmem:[%s3 + $0x4] sm:$0xf]
          %v902 = vld [vmem:[%s3 + $0x8] sm:$0xf]
          %v903 = vld [vmem:[%s3 + $0xc] sm:$0xf]
          %v904 = vld [vmem:[%s3 + $0x10] sm:$0xf]
          %v905 = vld [vmem:[%s3 + $0x14] sm:$0xf]
          %v906 = vld [vmem:[%s3 + $0x18] sm:$0xf]
          %v907 = vld [vmem:[%s3 + $0x1c] sm:$0xf]
          %v908 = vld [vmem:[%s3 + $0x20] sm:$0xf]
          %v909 = vld [vmem:[%s3 + $0x24] sm:$0xf]
          %v910 = vld [vmem:[%s3 + $0x28] sm:$0xf]
          %v911 = vld [vmem:[%s3 + $0x2c] sm:$0xf]
          %v912 = vpack.c.bf16 %v797, %v796
          %v913 = vpack.c.bf16 %v799, %v798
          %v914 = vpack.c.bf16 %v801, %v800
          %v915 = vpack.c.bf16 %v803, %v802
          %v916 = vpack.c.bf16 %v805, %v804
          %v917 = vpack.c.bf16 %v807, %v806
          %v918 = vpack.c.bf16 %v809, %v808
          %v919 = vpack.c.bf16 %v811, %v810
          %v920 = vld [vmem:[%s4] sm:$0xf]
          %v921 = vld [vmem:[%s4 + $0x4] sm:$0xf]
          %v922 = vld [vmem:[%s4 + $0x8] sm:$0xf]
          %v923 = vld [vmem:[%s4 + $0xc] sm:$0xf]
          %v928 = vunpack.c.l.b16 %v920
          %v929 = vunpack.c.l.b16 %v921
          %v930 = vunpack.c.l.b16 %v922
          %v931 = vunpack.c.l.b16 %v923
          %v932 = vpack.c.b16 %v929, %v928
          %v933 = vpack.c.b16 %v931, %v930
          %vm936 = vcmask 261120
          %v938 = vsel %vm936, %v912, 0
          %v941 = vsel %vm936, %v913, 0
          %v944 = vsel %vm936, %v914, 0
          %v947 = vsel %vm936, %v915, 0
          %v950 = vsel %vm936, %v916, 0
          %v953 = vsel %vm936, %v917, 0
          %v956 = vsel %vm936, %v918, 0
          %v959 = vsel %vm936, %v919, 0
          %961 = vmatprep.subr.bf16.mxu0 0
          %962 = vmatpush1.bf16.msra.mxu0 %v932
          %963 = vmatprep.subr.bf16.mxu0 0
          %964 = vmatpush1.bf16.msra.mxu0 %v933
          %965 = vmatprep.subr.bf16.mxu0 0
          %966 = vmatpush1.bf16.msra.mxu0 0
          %967 = vmatprep.subr.bf16.mxu0 0
          %968 = vmatpush1.bf16.msra.mxu0 0
          %969 = vmatprep.subr.bf16.mxu0 0
          %970 = vmatpush1.bf16.msra.mxu0 0
          %971 = vmatprep.subr.bf16.mxu0 0
          %972 = vmatpush1.bf16.msra.mxu0 0
          %973 = vmatprep.subr.bf16.mxu0 0
          %974 = vmatpush1.bf16.msra.mxu0 0
          %975 = vmatprep.subr.bf16.mxu0 0
          %976 = vmatpush1.bf16.msra.mxu0 0
          %977 = vmatprep.subr.bf16.mxu0 0
          %978 = vmatpush1.bf16.msra.mxu0 0
          %979 = vmatprep.subr.bf16.mxu0 0
          %980 = vmatpush1.bf16.msra.mxu0 0
          %981 = vmatprep.subr.bf16.mxu0 0
          %982 = vmatpush1.bf16.msra.mxu0 0
          %983 = vmatprep.subr.bf16.mxu0 0
          %984 = vmatpush1.bf16.msra.mxu0 0
          %985 = vmatprep.subr.bf16.mxu0 0
          %986 = vmatpush1.bf16.msra.mxu0 0
          %987 = vmatprep.subr.bf16.mxu0 0
          %988 = vmatpush1.bf16.msra.mxu0 0
          %989 = vmatprep.subr.bf16.mxu0 0
          %990 = vmatpush1.bf16.msra.mxu0 0
          %991 = vmatprep.subr.bf16.mxu0 0
          %992 = vmatpush1.bf16.msra.mxu0 0
          %993 = vmatprep.mubr.bf16.mxu0 0
          %994 = vmatmul.mubr.bf16.gmra.mrb[0].mxu0 %v938
          %v995 = vpop.f32.mrb[0].mxu0
          %v996 = vadd.f32 0.0, %v995
          %v997 = vpop.f32.mrb[0].mxu0
          %v998 = vpop.f32.mrb[0].mxu0
          %v999 = vadd.f32 0.0, %v998
          %v1000 = vpop.f32.mrb[0].mxu0
          %1001 = vmatprep.mubr.bf16.mxu0 0
          %1002 = vmatmul.mubr.bf16.gmra.mrb[0].mxu0 %v941
          %v1003 = vpop.f32.mrb[0].mxu0
          %v1004 = vadd.f32 0.0, %v1003
          %v1005 = vpop.f32.mrb[0].mxu0
          %v1006 = vpop.f32.mrb[0].mxu0
          %v1007 = vadd.f32 0.0, %v1006
          %v1008 = vpop.f32.mrb[0].mxu0
          %1009 = vmatprep.mubr.bf16.mxu0 0
          %1010 = vmatmul.mubr.bf16.gmra.mrb[0].mxu0 %v944
          %v1011 = vpop.f32.mrb[0].mxu0
          %v1012 = vadd.f32 0.0, %v1011
          %v1013 = vpop.f32.mrb[0].mxu0
          %v1014 = vpop.f32.mrb[0].mxu0
          %v1015 = vadd.f32 0.0, %v1014
          %v1016 = vpop.f32.mrb[0].mxu0
          %1017 = vmatprep.mubr.bf16.mxu0 0
          %1018 = vmatmul.mubr.bf16.gmra.mrb[0].mxu0 %v947
          %v1019 = vpop.f32.mrb[0].mxu0
          %v1020 = vadd.f32 0.0, %v1019
          %v1021 = vpop.f32.mrb[0].mxu0
          %v1022 = vpop.f32.mrb[0].mxu0
          %v1023 = vadd.f32 0.0, %v1022
          %v1024 = vpop.f32.mrb[0].mxu0
          %1025 = vmatprep.mubr.bf16.mxu0 0
          %1026 = vmatmul.mubr.bf16.gmra.mrb[0].mxu0 %v950
          %v1027 = vpop.f32.mrb[0].mxu0
          %v1028 = vadd.f32 0.0, %v1027
          %v1029 = vpop.f32.mrb[0].mxu0
          %v1030 = vpop.f32.mrb[0].mxu0
          %v1031 = vadd.f32 0.0, %v1030
          %v1032 = vpop.f32.mrb[0].mxu0
          %1033 = vmatprep.mubr.bf16.mxu0 0
          %1034 = vmatmul.mubr.bf16.gmra.mrb[0].mxu0 %v953
          %v1035 = vpop.f32.mrb[0].mxu0
          %v1036 = vadd.f32 0.0, %v1035
          %v1037 = vpop.f32.mrb[0].mxu0
          %v1038 = vpop.f32.mrb[0].mxu0
          %v1039 = vadd.f32 0.0, %v1038
          %v1040 = vpop.f32.mrb[0].mxu0
          %1041 = vmatprep.mubr.bf16.mxu0 0
          %1042 = vmatmul.mubr.bf16.gmra.mrb[0].mxu0 %v956
          %v1043 = vpop.f32.mrb[0].mxu0
          %v1044 = vadd.f32 0.0, %v1043
          %v1045 = vpop.f32.mrb[0].mxu0
          %v1046 = vpop.f32.mrb[0].mxu0
          %v1047 = vadd.f32 0.0, %v1046
          %v1048 = vpop.f32.mrb[0].mxu0
          %1049 = vmatprep.mubr.bf16.mxu0 0
          %1050 = vmatmul.mubr.bf16.gmra.mrb[0].mxu0 %v959
          %v1051 = vpop.f32.mrb[0].mxu0
          %v1052 = vadd.f32 0.0, %v1051
          %v1053 = vpop.f32.mrb[0].mxu0
          %v1054 = vpop.f32.mrb[0].mxu0
          %v1055 = vadd.f32 0.0, %v1054
          %v1056 = vpop.f32.mrb[0].mxu0
          %1057 = vdwg.mxu0
          %v1070 = vunpack.c.l.b16 %v900
          %v1071 = vunpack.c.l.b16 %v901
          %v1072 = vunpack.c.l.b16 %v902
          %v1073 = vunpack.c.l.b16 %v903
          %v1074 = vunpack.c.l.b16 %v904
          %v1075 = vunpack.c.l.b16 %v905
          %v1076 = vunpack.c.l.b16 %v906
          %v1077 = vunpack.c.l.b16 %v907
          %v1078 = vunpack.c.l.b16 %v908
          %v1079 = vunpack.c.l.b16 %v909
          %v1080 = vunpack.c.l.b16 %v910
          %v1081 = vunpack.c.l.b16 %v911
          %v1082 = vpack.c.b16 %v1071, %v1070
          %v1083 = vpack.c.b16 %v1073, %v1072
          %v1084 = vpack.c.b16 %v1075, %v1074
          %v1085 = vpack.c.b16 %v1077, %v1076
          %v1086 = vpack.c.b16 %v1079, %v1078
          %v1087 = vpack.c.b16 %v1081, %v1080
          %v1095 = vsel %vm695, %v892, 0
          %v1098 = vsel %vm695, %v893, 0
          %v1101 = vsel %vm695, %v894, 0
          %v1104 = vsel %vm695, %v895, 0
          %v1107 = vsel %vm695, %v896, 0
          %v1110 = vsel %vm695, %v897, 0
          %v1113 = vsel %vm695, %v898, 0
          %v1116 = vsel %vm695, %v899, 0
          %1118 = vmatprep.subr.bf16.mxu0 0
          %1119 = vmatpush1.bf16.msra.mxu0 %v1082
          %1120 = vmatprep.subr.bf16.mxu0 0
          %1121 = vmatpush1.bf16.msra.mxu0 %v1083
          %1122 = vmatprep.subr.bf16.mxu0 0
          %1123 = vmatpush1.bf16.msra.mxu0 %v1084
          %1124 = vmatprep.subr.bf16.mxu0 0
          %1125 = vmatpush1.bf16.msra.mxu0 %v1085
          %1126 = vmatprep.subr.bf16.mxu0 0
          %1127 = vmatpush1.bf16.msra.mxu0 %v1086
          %1128 = vmatprep.subr.bf16.mxu0 0
          %1129 = vmatpush1.bf16.msra.mxu0 %v1087
          %1130 = vmatprep.subr.bf16.mxu0 0
          %1131 = vmatpush1.bf16.msra.mxu0 0
          %1132 = vmatprep.subr.bf16.mxu0 0
          %1133 = vmatpush1.bf16.msra.mxu0 0
          %1134 = vmatprep.subr.bf16.mxu0 0
          %1135 = vmatpush1.bf16.msra.mxu0 0
          %1136 = vmatprep.subr.bf16.mxu0 0
          %1137 = vmatpush1.bf16.msra.mxu0 0
          %1138 = vmatprep.subr.bf16.mxu0 0
          %1139 = vmatpush1.bf16.msra.mxu0 0
          %1140 = vmatprep.subr.bf16.mxu0 0
          %1141 = vmatpush1.bf16.msra.mxu0 0
          %1142 = vmatprep.subr.bf16.mxu0 0
          %1143 = vmatpush1.bf16.msra.mxu0 0
          %1144 = vmatprep.subr.bf16.mxu0 0
          %1145 = vmatpush1.bf16.msra.mxu0 0
          %1146 = vmatprep.subr.bf16.mxu0 0
          %1147 = vmatpush1.bf16.msra.mxu0 0
          %1148 = vmatprep.subr.bf16.mxu0 0
          %1149 = vmatpush1.bf16.msra.mxu0 0
          %1150 = vmatprep.mubr.bf16.mxu0 0
          %1151 = vmatmul.mubr.bf16.gmra.mrb[0].mxu0 %v1095
          %v1152 = vpop.f32.mrb[0].mxu0
          %v1153 = vadd.f32 %v996, %v1152
          %v1154 = vpop.f32.mrb[0].mxu0
          %v1155 = vpop.f32.mrb[0].mxu0
          %v1156 = vadd.f32 %v999, %v1155
          %v1157 = vpop.f32.mrb[0].mxu0
          %1158 = vmatprep.mubr.bf16.mxu0 0
          %1159 = vmatmul.mubr.bf16.gmra.mrb[0].mxu0 %v1098
          %v1160 = vpop.f32.mrb[0].mxu0
          %v1161 = vadd.f32 %v1004, %v1160
          %v1162 = vpop.f32.mrb[0].mxu0
          %v1163 = vpop.f32.mrb[0].mxu0
          %v1164 = vadd.f32 %v1007, %v1163
          %v1165 = vpop.f32.mrb[0].mxu0
          %1166 = vmatprep.mubr.bf16.mxu0 0
          %1167 = vmatmul.mubr.bf16.gmra.mrb[0].mxu0 %v1101
          %v1168 = vpop.f32.mrb[0].mxu0
          %v1169 = vadd.f32 %v1012, %v1168
          %v1170 = vpop.f32.mrb[0].mxu0
          %v1171 = vpop.f32.mrb[0].mxu0
          %v1172 = vadd.f32 %v1015, %v1171
          %v1173 = vpop.f32.mrb[0].mxu0
          %1174 = vmatprep.mubr.bf16.mxu0 0
          %1175 = vmatmul.mubr.bf16.gmra.mrb[0].mxu0 %v1104
          %v1176 = vpop.f32.mrb[0].mxu0
          %v1177 = vadd.f32 %v1020, %v1176
          %v1178 = vpop.f32.mrb[0].mxu0
          %v1179 = vpop.f32.mrb[0].mxu0
          %v1180 = vadd.f32 %v1023, %v1179
          %v1181 = vpop.f32.mrb[0].mxu0
          %1182 = vmatprep.mubr.bf16.mxu0 0
          %1183 = vmatmul.mubr.bf16.gmra.mrb[0].mxu0 %v1107
          %v1184 = vpop.f32.mrb[0].mxu0
          %v1185 = vadd.f32 %v1028, %v1184
          %v1186 = vpop.f32.mrb[0].mxu0
          %v1187 = vpop.f32.mrb[0].mxu0
          %v1188 = vadd.f32 %v1031, %v1187
          %v1189 = vpop.f32.mrb[0].mxu0
          %1190 = vmatprep.mubr.bf16.mxu0 0
          %1191 = vmatmul.mubr.bf16.gmra.mrb[0].mxu0 %v1110
          %v1192 = vpop.f32.mrb[0].mxu0
          %v1193 = vadd.f32 %v1036, %v1192
          %v1194 = vpop.f32.mrb[0].mxu0
          %v1195 = vpop.f32.mrb[0].mxu0
          %v1196 = vadd.f32 %v1039, %v1195
          %v1197 = vpop.f32.mrb[0].mxu0
          %1198 = vmatprep.mubr.bf16.mxu0 0
          %1199 = vmatmul.mubr.bf16.gmra.mrb[0].mxu0 %v1113
          %v1200 = vpop.f32.mrb[0].mxu0
          %v1201 = vadd.f32 %v1044, %v1200
          %v1202 = vpop.f32.mrb[0].mxu0
          %v1203 = vpop.f32.mrb[0].mxu0
          %v1204 = vadd.f32 %v1047, %v1203
          %v1205 = vpop.f32.mrb[0].mxu0
          %1206 = vmatprep.mubr.bf16.mxu0 0
          %1207 = vmatmul.mubr.bf16.gmra.mrb[0].mxu0 %v1116
          %v1208 = vpop.f32.mrb[0].mxu0
          %v1209 = vadd.f32 %v1052, %v1208
          %v1210 = vpop.f32.mrb[0].mxu0
          %v1211 = vpop.f32.mrb[0].mxu0
          %v1212 = vadd.f32 %v1055, %v1211
          %v1213 = vpop.f32.mrb[0].mxu0
          %1214 = vdwg.mxu0
          %v1215 = vpack.c.bf16 %v861, %v860
          %v1216 = vpack.c.bf16 %v863, %v862
          %v1217 = vpack.c.bf16 %v865, %v864
          %v1218 = vpack.c.bf16 %v867, %v866
          %v1219 = vpack.c.bf16 %v869, %v868
          %v1220 = vpack.c.bf16 %v871, %v870
          %v1221 = vpack.c.bf16 %v873, %v872
          %v1222 = vpack.c.bf16 %v875, %v874
          %v1223 = vld [vmem:[%s4 + $0x10] sm:$0xf]
          %v1224 = vld [vmem:[%s4 + $0x14] sm:$0xf]
          %v1225 = vld [vmem:[%s4 + $0x18] sm:$0xf]
          %v1226 = vld [vmem:[%s4 + $0x1c] sm:$0xf]
          %v1231 = vunpack.c.l.b16 %v1223
          %v1232 = vunpack.c.l.b16 %v1224
          %v1233 = vunpack.c.l.b16 %v1225
          %v1234 = vunpack.c.l.b16 %v1226
          %v1235 = vpack.c.b16 %v1232, %v1231
          %v1236 = vpack.c.b16 %v1234, %v1233
          %v1240 = vsel %vm936, %v1215, 0
          %v1243 = vsel %vm936, %v1216, 0
          %v1246 = vsel %vm936, %v1217, 0
          %v1249 = vsel %vm936, %v1218, 0
          %v1252 = vsel %vm936, %v1219, 0
          %v1255 = vsel %vm936, %v1220, 0
          %v1258 = vsel %vm936, %v1221, 0
          %v1261 = vsel %vm936, %v1222, 0
          %1263 = vmatprep.subr.bf16.mxu0 0
          %1264 = vmatpush1.bf16.msra.mxu0 %v1235
          %1265 = vmatprep.subr.bf16.mxu0 0
          %1266 = vmatpush1.bf16.msra.mxu0 %v1236
          %1267 = vmatprep.subr.bf16.mxu0 0
          %1268 = vmatpush1.bf16.msra.mxu0 0
          %1269 = vmatprep.subr.bf16.mxu0 0
          %1270 = vmatpush1.bf16.msra.mxu0 0
          %1271 = vmatprep.subr.bf16.mxu0 0
          %1272 = vmatpush1.bf16.msra.mxu0 0
          %1273 = vmatprep.subr.bf16.mxu0 0
          %1274 = vmatpush1.bf16.msra.mxu0 0
          %1275 = vmatprep.subr.bf16.mxu0 0
          %1276 = vmatpush1.bf16.msra.mxu0 0
          %1277 = vmatprep.subr.bf16.mxu0 0
          %1278 = vmatpush1.bf16.msra.mxu0 0
          %1279 = vmatprep.subr.bf16.mxu0 0
          %1280 = vmatpush1.bf16.msra.mxu0 0
          %1281 = vmatprep.subr.bf16.mxu0 0
          %1282 = vmatpush1.bf16.msra.mxu0 0
          %1283 = vmatprep.subr.bf16.mxu0 0
          %1284 = vmatpush1.bf16.msra.mxu0 0
          %1285 = vmatprep.subr.bf16.mxu0 0
          %1286 = vmatpush1.bf16.msra.mxu0 0
          %1287 = vmatprep.subr.bf16.mxu0 0
          %1288 = vmatpush1.bf16.msra.mxu0 0
          %1289 = vmatprep.subr.bf16.mxu0 0
          %1290 = vmatpush1.bf16.msra.mxu0 0
          %1291 = vmatprep.subr.bf16.mxu0 0
          %1292 = vmatpush1.bf16.msra.mxu0 0
          %1293 = vmatprep.subr.bf16.mxu0 0
          %1294 = vmatpush1.bf16.msra.mxu0 0
          %1295 = vmatprep.mubr.bf16.mxu0 0
          %1296 = vmatmul.mubr.bf16.gmra.mrb[0].mxu0 %v1240
          %v1297 = vpop.f32.mrb[0].mxu0
          %v1298 = vadd.f32 0.0, %v1297
          %v1299 = vpop.f32.mrb[0].mxu0
          %v1300 = vpop.f32.mrb[0].mxu0
          %v1301 = vadd.f32 0.0, %v1300
          %v1302 = vpop.f32.mrb[0].mxu0
          %1303 = vmatprep.mubr.bf16.mxu0 0
          %1304 = vmatmul.mubr.bf16.gmra.mrb[0].mxu0 %v1243
          %v1305 = vpop.f32.mrb[0].mxu0
          %v1306 = vadd.f32 0.0, %v1305
          %v1307 = vpop.f32.mrb[0].mxu0
          %v1308 = vpop.f32.mrb[0].mxu0
          %v1309 = vadd.f32 0.0, %v1308
          %v1310 = vpop.f32.mrb[0].mxu0
          %1311 = vmatprep.mubr.bf16.mxu0 0
          %1312 = vmatmul.mubr.bf16.gmra.mrb[0].mxu0 %v1246
          %v1313 = vpop.f32.mrb[0].mxu0
          %v1314 = vadd.f32 0.0, %v1313
          %v1315 = vpop.f32.mrb[0].mxu0
          %v1316 = vpop.f32.mrb[0].mxu0
          %v1317 = vadd.f32 0.0, %v1316
          %v1318 = vpop.f32.mrb[0].mxu0
          %1319 = vmatprep.mubr.bf16.mxu0 0
          %1320 = vmatmul.mubr.bf16.gmra.mrb[0].mxu0 %v1249
          %v1321 = vpop.f32.mrb[0].mxu0
          %v1322 = vadd.f32 0.0, %v1321
          %v1323 = vpop.f32.mrb[0].mxu0
          %v1324 = vpop.f32.mrb[0].mxu0
          %v1325 = vadd.f32 0.0, %v1324
          %v1326 = vpop.f32.mrb[0].mxu0
          %1327 = vmatprep.mubr.bf16.mxu0 0
          %1328 = vmatmul.mubr.bf16.gmra.mrb[0].mxu0 %v1252
          %v1329 = vpop.f32.mrb[0].mxu0
          %v1330 = vadd.f32 0.0, %v1329
          %v1331 = vpop.f32.mrb[0].mxu0
          %v1332 = vpop.f32.mrb[0].mxu0
          %v1333 = vadd.f32 0.0, %v1332
          %v1334 = vpop.f32.mrb[0].mxu0
          %1335 = vmatprep.mubr.bf16.mxu0 0
          %1336 = vmatmul.mubr.bf16.gmra.mrb[0].mxu0 %v1255
          %v1337 = vpop.f32.mrb[0].mxu0
          %v1338 = vadd.f32 0.0, %v1337
          %v1339 = vpop.f32.mrb[0].mxu0
          %v1340 = vpop.f32.mrb[0].mxu0
          %v1341 = vadd.f32 0.0, %v1340
          %v1342 = vpop.f32.mrb[0].mxu0
          %1343 = vmatprep.mubr.bf16.mxu0 0
          %1344 = vmatmul.mubr.bf16.gmra.mrb[0].mxu0 %v1258
          %v1345 = vpop.f32.mrb[0].mxu0
          %v1346 = vadd.f32 0.0, %v1345
          %v1347 = vpop.f32.mrb[0].mxu0
          %v1348 = vpop.f32.mrb[0].mxu0
          %v1349 = vadd.f32 0.0, %v1348
          %v1350 = vpop.f32.mrb[0].mxu0
          %1351 = vmatprep.mubr.bf16.mxu0 0
          %1352 = vmatmul.mubr.bf16.gmra.mrb[0].mxu0 %v1261
          %v1353 = vpop.f32.mrb[0].mxu0
          %v1354 = vadd.f32 0.0, %v1353
          %v1355 = vpop.f32.mrb[0].mxu0
          %v1356 = vpop.f32.mrb[0].mxu0
          %v1357 = vadd.f32 0.0, %v1356
          %v1358 = vpop.f32.mrb[0].mxu0
          %1359 = vdwg.mxu0
          %v1360 = vadd.f32 %v1153, %v1298
          %v1361 = vadd.f32 %v1156, %v1301
          %v1362 = vadd.f32 %v1161, %v1306
          %v1363 = vadd.f32 %v1164, %v1309
          %v1364 = vadd.f32 %v1169, %v1314
          %v1365 = vadd.f32 %v1172, %v1317
          %v1366 = vadd.f32 %v1177, %v1322
          %v1367 = vadd.f32 %v1180, %v1325
          %v1368 = vadd.f32 %v1185, %v1330
          %v1369 = vadd.f32 %v1188, %v1333
          %v1370 = vadd.f32 %v1193, %v1338
          %v1371 = vadd.f32 %v1196, %v1341
          %v1372 = vadd.f32 %v1201, %v1346
          %v1373 = vadd.f32 %v1204, %v1349
          %v1374 = vadd.f32 %v1209, %v1354
          %v1375 = vadd.f32 %v1212, %v1357
          %v1376 = vld [vmem:[%s4 + $0x20] sm:$0xf]
          %v1377 = vld [vmem:[%s4 + $0x24] sm:$0xf]
          %v1378 = vld [vmem:[%s4 + $0x28] sm:$0xf]
          %v1379 = vld [vmem:[%s4 + $0x2c] sm:$0xf]
          %1388 = vrot.lane.b32.xlu0 %v912, 96
          %v1389 = vpop.permute.xlu0 %1388
          %1390 = vrot.lane.b32.xlu0 %v913, 96
          %v1391 = vpop.permute.xlu0 %1390
          %1392 = vrot.lane.b32.xlu0 %v914, 96
          %v1393 = vpop.permute.xlu0 %1392
          %1394 = vrot.lane.b32.xlu0 %v915, 96
          %v1395 = vpop.permute.xlu0 %1394
          %1396 = vrot.lane.b32.xlu0 %v916, 96
          %v1397 = vpop.permute.xlu0 %1396
          %1398 = vrot.lane.b32.xlu0 %v917, 96
          %v1399 = vpop.permute.xlu0 %1398
          %1400 = vrot.lane.b32.xlu0 %v918, 96
          %v1401 = vpop.permute.xlu0 %1400
          %1402 = vrot.lane.b32.xlu0 %v919, 96
          %v1403 = vpop.permute.xlu0 %1402
          %v1408 = vunpack.c.l.b16 %v1376
          %v1409 = vunpack.c.l.b16 %v1377
          %v1410 = vunpack.c.l.b16 %v1378
          %v1411 = vunpack.c.l.b16 %v1379
          %v1412 = vpack.c.b16 %v1409, %v1408
          %v1413 = vpack.c.b16 %v1411, %v1410
          %v1417 = vsel %vm936, %v1389, 0
          %v1420 = vsel %vm936, %v1391, 0
          %v1423 = vsel %vm936, %v1393, 0
          %v1426 = vsel %vm936, %v1395, 0
          %v1429 = vsel %vm936, %v1397, 0
          %v1432 = vsel %vm936, %v1399, 0
          %v1435 = vsel %vm936, %v1401, 0
          %v1438 = vsel %vm936, %v1403, 0
          %1440 = vmatprep.subr.bf16.mxu0 0
          %1441 = vmatpush1.bf16.msra.mxu0 %v1412
          %1442 = vmatprep.subr.bf16.mxu0 0
          %1443 = vmatpush1.bf16.msra.mxu0 %v1413
          %1444 = vmatprep.subr.bf16.mxu0 0
          %1445 = vmatpush1.bf16.msra.mxu0 0
          %1446 = vmatprep.subr.bf16.mxu0 0
          %1447 = vmatpush1.bf16.msra.mxu0 0
          %1448 = vmatprep.subr.bf16.mxu0 0
          %1449 = vmatpush1.bf16.msra.mxu0 0
          %1450 = vmatprep.subr.bf16.mxu0 0
          %1451 = vmatpush1.bf16.msra.mxu0 0
          %1452 = vmatprep.subr.bf16.mxu0 0
          %1453 = vmatpush1.bf16.msra.mxu0 0
          %1454 = vmatprep.subr.bf16.mxu0 0
          %1455 = vmatpush1.bf16.msra.mxu0 0
          %1456 = vmatprep.subr.bf16.mxu0 0
          %1457 = vmatpush1.bf16.msra.mxu0 0
          %1458 = vmatprep.subr.bf16.mxu0 0
          %1459 = vmatpush1.bf16.msra.mxu0 0
          %1460 = vmatprep.subr.bf16.mxu0 0
          %1461 = vmatpush1.bf16.msra.mxu0 0
          %1462 = vmatprep.subr.bf16.mxu0 0
          %1463 = vmatpush1.bf16.msra.mxu0 0
          %1464 = vmatprep.subr.bf16.mxu0 0
          %1465 = vmatpush1.bf16.msra.mxu0 0
          %1466 = vmatprep.subr.bf16.mxu0 0
          %1467 = vmatpush1.bf16.msra.mxu0 0
          %1468 = vmatprep.subr.bf16.mxu0 0
          %1469 = vmatpush1.bf16.msra.mxu0 0
          %1470 = vmatprep.subr.bf16.mxu0 0
          %1471 = vmatpush1.bf16.msra.mxu0 0
          %1472 = vmatprep.mubr.bf16.mxu0 0
          %1473 = vmatmul.mubr.bf16.gmra.mrb[0].mxu0 %v1417
          %v1474 = vpop.f32.mrb[0].mxu0
          %v1475 = vadd.f32 0.0, %v1474
          %v1476 = vpop.f32.mrb[0].mxu0
          %v1477 = vpop.f32.mrb[0].mxu0
          %v1478 = vadd.f32 0.0, %v1477
          %v1479 = vpop.f32.mrb[0].mxu0
          %1480 = vmatprep.mubr.bf16.mxu0 0
          %1481 = vmatmul.mubr.bf16.gmra.mrb[0].mxu0 %v1420
          %v1482 = vpop.f32.mrb[0].mxu0
          %v1483 = vadd.f32 0.0, %v1482
          %v1484 = vpop.f32.mrb[0].mxu0
          %v1485 = vpop.f32.mrb[0].mxu0
          %v1486 = vadd.f32 0.0, %v1485
          %v1487 = vpop.f32.mrb[0].mxu0
          %1488 = vmatprep.mubr.bf16.mxu0 0
          %1489 = vmatmul.mubr.bf16.gmra.mrb[0].mxu0 %v1423
          %v1490 = vpop.f32.mrb[0].mxu0
          %v1491 = vadd.f32 0.0, %v1490
          %v1492 = vpop.f32.mrb[0].mxu0
          %v1493 = vpop.f32.mrb[0].mxu0
          %v1494 = vadd.f32 0.0, %v1493
          %v1495 = vpop.f32.mrb[0].mxu0
          %1496 = vmatprep.mubr.bf16.mxu0 0
          %1497 = vmatmul.mubr.bf16.gmra.mrb[0].mxu0 %v1426
          %v1498 = vpop.f32.mrb[0].mxu0
          %v1499 = vadd.f32 0.0, %v1498
          %v1500 = vpop.f32.mrb[0].mxu0
          %v1501 = vpop.f32.mrb[0].mxu0
          %v1502 = vadd.f32 0.0, %v1501
          %v1503 = vpop.f32.mrb[0].mxu0
          %1504 = vmatprep.mubr.bf16.mxu0 0
          %1505 = vmatmul.mubr.bf16.gmra.mrb[0].mxu0 %v1429
          %v1506 = vpop.f32.mrb[0].mxu0
          %v1507 = vadd.f32 0.0, %v1506
          %v1508 = vpop.f32.mrb[0].mxu0
          %v1509 = vpop.f32.mrb[0].mxu0
          %v1510 = vadd.f32 0.0, %v1509
          %v1511 = vpop.f32.mrb[0].mxu0
          %1512 = vmatprep.mubr.bf16.mxu0 0
          %1513 = vmatmul.mubr.bf16.gmra.mrb[0].mxu0 %v1432
          %v1514 = vpop.f32.mrb[0].mxu0
          %v1515 = vadd.f32 0.0, %v1514
          %v1516 = vpop.f32.mrb[0].mxu0
          %v1517 = vpop.f32.mrb[0].mxu0
          %v1518 = vadd.f32 0.0, %v1517
          %v1519 = vpop.f32.mrb[0].mxu0
          %1520 = vmatprep.mubr.bf16.mxu0 0
          %1521 = vmatmul.mubr.bf16.gmra.mrb[0].mxu0 %v1435
          %v1522 = vpop.f32.mrb[0].mxu0
          %v1523 = vadd.f32 0.0, %v1522
          %v1524 = vpop.f32.mrb[0].mxu0
          %v1525 = vpop.f32.mrb[0].mxu0
          %v1526 = vadd.f32 0.0, %v1525
          %v1527 = vpop.f32.mrb[0].mxu0
          %1528 = vmatprep.mubr.bf16.mxu0 0
          %1529 = vmatmul.mubr.bf16.gmra.mrb[0].mxu0 %v1438
          %v1530 = vpop.f32.mrb[0].mxu0
          %v1531 = vadd.f32 0.0, %v1530
          %v1532 = vpop.f32.mrb[0].mxu0
          %v1533 = vpop.f32.mrb[0].mxu0
          %v1534 = vadd.f32 0.0, %v1533
          %v1535 = vpop.f32.mrb[0].mxu0
          %1536 = vdwg.mxu0
          %v1537 = vadd.f32 %v1360, %v1475
          %v1538 = vadd.f32 %v1361, %v1478
          %v1539 = vadd.f32 %v1362, %v1483
          %v1540 = vadd.f32 %v1363, %v1486
          %v1541 = vadd.f32 %v1364, %v1491
          %v1542 = vadd.f32 %v1365, %v1494
          %v1543 = vadd.f32 %v1366, %v1499
          %v1544 = vadd.f32 %v1367, %v1502
          %v1545 = vadd.f32 %v1368, %v1507
          %v1546 = vadd.f32 %v1369, %v1510
          %v1547 = vadd.f32 %v1370, %v1515
          %v1548 = vadd.f32 %v1371, %v1518
          %v1549 = vadd.f32 %v1372, %v1523
          %v1550 = vadd.f32 %v1373, %v1526
          %v1551 = vadd.f32 %v1374, %v1531
          %v1552 = vadd.f32 %v1375, %v1534
          %v1553 = vpack.c.bf16 %v877, %v876
          %v1554 = vpack.c.bf16 %v879, %v878
          %v1555 = vpack.c.bf16 %v881, %v880
          %v1556 = vpack.c.bf16 %v883, %v882
          %v1557 = vpack.c.bf16 %v885, %v884
          %v1558 = vpack.c.bf16 %v887, %v886
          %v1559 = vpack.c.bf16 %v889, %v888
          %v1560 = vpack.c.bf16 %v891, %v890
          %v1561 = vld [vmem:[%s4 + $0x30] sm:$0xf]
          %v1562 = vld [vmem:[%s4 + $0x34] sm:$0xf]
          %v1563 = vld [vmem:[%s4 + $0x38] sm:$0xf]
          %v1564 = vld [vmem:[%s4 + $0x3c] sm:$0xf]
          %v1569 = vunpack.c.l.b16 %v1561
          %v1570 = vunpack.c.l.b16 %v1562
          %v1571 = vunpack.c.l.b16 %v1563
          %v1572 = vunpack.c.l.b16 %v1564
          %v1573 = vpack.c.b16 %v1570, %v1569
          %v1574 = vpack.c.b16 %v1572, %v1571
          %v1578 = vsel %vm936, %v1553, 0
          %v1581 = vsel %vm936, %v1554, 0
          %v1584 = vsel %vm936, %v1555, 0
          %v1587 = vsel %vm936, %v1556, 0
          %v1590 = vsel %vm936, %v1557, 0
          %v1593 = vsel %vm936, %v1558, 0
          %v1596 = vsel %vm936, %v1559, 0
          %v1599 = vsel %vm936, %v1560, 0
          %1601 = vmatprep.subr.bf16.mxu0 0
          %1602 = vmatpush1.bf16.msra.mxu0 %v1573
          %1603 = vmatprep.subr.bf16.mxu0 0
          %1604 = vmatpush1.bf16.msra.mxu0 %v1574
          %1605 = vmatprep.subr.bf16.mxu0 0
          %1606 = vmatpush1.bf16.msra.mxu0 0
          %1607 = vmatprep.subr.bf16.mxu0 0
          %1608 = vmatpush1.bf16.msra.mxu0 0
          %1609 = vmatprep.subr.bf16.mxu0 0
          %1610 = vmatpush1.bf16.msra.mxu0 0
          %1611 = vmatprep.subr.bf16.mxu0 0
          %1612 = vmatpush1.bf16.msra.mxu0 0
          %1613 = vmatprep.subr.bf16.mxu0 0
          %1614 = vmatpush1.bf16.msra.mxu0 0
          %1615 = vmatprep.subr.bf16.mxu0 0
          %1616 = vmatpush1.bf16.msra.mxu0 0
          %1617 = vmatprep.subr.bf16.mxu0 0
          %1618 = vmatpush1.bf16.msra.mxu0 0
          %1619 = vmatprep.subr.bf16.mxu0 0
          %1620 = vmatpush1.bf16.msra.mxu0 0
          %1621 = vmatprep.subr.bf16.mxu0 0
          %1622 = vmatpush1.bf16.msra.mxu0 0
          %1623 = vmatprep.subr.bf16.mxu0 0
          %1624 = vmatpush1.bf16.msra.mxu0 0
          %1625 = vmatprep.subr.bf16.mxu0 0
          %1626 = vmatpush1.bf16.msra.mxu0 0
          %1627 = vmatprep.subr.bf16.mxu0 0
          %1628 = vmatpush1.bf16.msra.mxu0 0
          %1629 = vmatprep.subr.bf16.mxu0 0
          %1630 = vmatpush1.bf16.msra.mxu0 0
          %1631 = vmatprep.subr.bf16.mxu0 0
          %1632 = vmatpush1.bf16.msra.mxu0 0
          %1633 = vmatprep.mubr.bf16.mxu0 0
          %1634 = vmatmul.mubr.bf16.gmra.mrb[0].mxu0 %v1578
          %v1635 = vpop.f32.mrb[0].mxu0
          %v1636 = vadd.f32 0.0, %v1635
          %v1637 = vpop.f32.mrb[0].mxu0
          %v1638 = vpop.f32.mrb[0].mxu0
          %v1639 = vadd.f32 0.0, %v1638
          %v1640 = vpop.f32.mrb[0].mxu0
          %1641 = vmatprep.mubr.bf16.mxu0 0
          %1642 = vmatmul.mubr.bf16.gmra.mrb[0].mxu0 %v1581
          %v1643 = vpop.f32.mrb[0].mxu0
          %v1644 = vadd.f32 0.0, %v1643
          %v1645 = vpop.f32.mrb[0].mxu0
          %v1646 = vpop.f32.mrb[0].mxu0
          %v1647 = vadd.f32 0.0, %v1646
          %v1648 = vpop.f32.mrb[0].mxu0
          %1649 = vmatprep.mubr.bf16.mxu0 0
          %1650 = vmatmul.mubr.bf16.gmra.mrb[0].mxu0 %v1584
          %v1651 = vpop.f32.mrb[0].mxu0
          %v1652 = vadd.f32 0.0, %v1651
          %v1653 = vpop.f32.mrb[0].mxu0
          %v1654 = vpop.f32.mrb[0].mxu0
          %v1655 = vadd.f32 0.0, %v1654
          %v1656 = vpop.f32.mrb[0].mxu0
          %1657 = vmatprep.mubr.bf16.mxu0 0
          %1658 = vmatmul.mubr.bf16.gmra.mrb[0].mxu0 %v1587
          %v1659 = vpop.f32.mrb[0].mxu0
          %v1660 = vadd.f32 0.0, %v1659
          %v1661 = vpop.f32.mrb[0].mxu0
          %v1662 = vpop.f32.mrb[0].mxu0
          %v1663 = vadd.f32 0.0, %v1662
          %v1664 = vpop.f32.mrb[0].mxu0
          %1665 = vmatprep.mubr.bf16.mxu0 0
          %1666 = vmatmul.mubr.bf16.gmra.mrb[0].mxu0 %v1590
          %v1667 = vpop.f32.mrb[0].mxu0
          %v1668 = vadd.f32 0.0, %v1667
          %v1669 = vpop.f32.mrb[0].mxu0
          %v1670 = vpop.f32.mrb[0].mxu0
          %v1671 = vadd.f32 0.0, %v1670
          %v1672 = vpop.f32.mrb[0].mxu0
          %1673 = vmatprep.mubr.bf16.mxu0 0
          %1674 = vmatmul.mubr.bf16.gmra.mrb[0].mxu0 %v1593
          %v1675 = vpop.f32.mrb[0].mxu0
          %v1676 = vadd.f32 0.0, %v1675
          %v1677 = vpop.f32.mrb[0].mxu0
          %v1678 = vpop.f32.mrb[0].mxu0
          %v1679 = vadd.f32 0.0, %v1678
          %v1680 = vpop.f32.mrb[0].mxu0
          %1681 = vmatprep.mubr.bf16.mxu0 0
          %1682 = vmatmul.mubr.bf16.gmra.mrb[0].mxu0 %v1596
          %v1683 = vpop.f32.mrb[0].mxu0
          %v1684 = vadd.f32 0.0, %v1683
          %v1685 = vpop.f32.mrb[0].mxu0
          %v1686 = vpop.f32.mrb[0].mxu0
          %v1687 = vadd.f32 0.0, %v1686
          %v1688 = vpop.f32.mrb[0].mxu0
          %1689 = vmatprep.mubr.bf16.mxu0 0
          %1690 = vmatmul.mubr.bf16.gmra.mrb[0].mxu0 %v1599
          %v1691 = vpop.f32.mrb[0].mxu0
          %v1692 = vadd.f32 0.0, %v1691
          %v1693 = vpop.f32.mrb[0].mxu0
          %v1694 = vpop.f32.mrb[0].mxu0
          %v1695 = vadd.f32 0.0, %v1694
          %v1696 = vpop.f32.mrb[0].mxu0
          %1697 = vdwg.mxu0
          %v1698 = vadd.f32 %v1537, %v1636
          %v1699 = vadd.f32 %v1538, %v1639
          %v1700 = vadd.f32 %v1539, %v1644
          %v1701 = vadd.f32 %v1540, %v1647
          %v1702 = vadd.f32 %v1541, %v1652
          %v1703 = vadd.f32 %v1542, %v1655
          %v1704 = vadd.f32 %v1543, %v1660
          %v1705 = vadd.f32 %v1544, %v1663
          %v1706 = vadd.f32 %v1545, %v1668
          %v1707 = vadd.f32 %v1546, %v1671
          %v1708 = vadd.f32 %v1547, %v1676
          %v1709 = vadd.f32 %v1548, %v1679
          %v1710 = vadd.f32 %v1549, %v1684
          %v1711 = vadd.f32 %v1550, %v1687
          %v1712 = vadd.f32 %v1551, %v1692
          %v1713 = vadd.f32 %v1552, %v1695
          %v1714 = vld [vmem:[%s5] sm:$0x1]
          %v1716 = vlaneseq
          %v1717 = vshrl.u32 %v1716, 7
          %v1718 = vsub.s32 0, %v1717
          %v1719 = vrot.slane %v1714, %v1718
          %v1721 = vadd.f32 %v1698, %v1719
          %v1722 = vadd.f32 %v1699, %v1719
          %v1723 = vadd.f32 %v1700, %v1719
          %v1724 = vadd.f32 %v1701, %v1719
          %v1725 = vadd.f32 %v1702, %v1719
          %v1726 = vadd.f32 %v1703, %v1719
          %v1727 = vadd.f32 %v1704, %v1719
          %v1728 = vadd.f32 %v1705, %v1719
          %v1729 = vadd.f32 %v1706, %v1719
          %v1730 = vadd.f32 %v1707, %v1719
          %v1731 = vadd.f32 %v1708, %v1719
          %v1732 = vadd.f32 %v1709, %v1719
          %v1733 = vadd.f32 %v1710, %v1719
          %v1734 = vadd.f32 %v1711, %v1719
          %v1735 = vadd.f32 %v1712, %v1719
          %v1736 = vadd.f32 %v1713, %v1719
          %v1737 = vld [vmem:[%s408] sm:$0xff]
          %v1738 = vld [vmem:[%s408 + $0x8] sm:$0xff]
          %v1739 = vld [vmem:[%s408 + $0x10] sm:$0xff]
          %v1740 = vld [vmem:[%s408 + $0x18] sm:$0xff]
          %v1741 = vld [vmem:[%s408 + $0x20] sm:$0xff]
          %v1742 = vld [vmem:[%s408 + $0x28] sm:$0xff]
          %v1743 = vld [vmem:[%s408 + $0x30] sm:$0xff]
          %v1744 = vld [vmem:[%s408 + $0x38] sm:$0xff]
          %v1745 = vld [vmem:[%s408 + $0x40] sm:$0xff]
          %v1746 = vld [vmem:[%s408 + $0x48] sm:$0xff]
          %v1747 = vld [vmem:[%s408 + $0x50] sm:$0xff]
          %v1748 = vld [vmem:[%s408 + $0x58] sm:$0xff]
          %v1749 = vld [vmem:[%s408 + $0x60] sm:$0xff]
          %v1750 = vld [vmem:[%s408 + $0x68] sm:$0xff]
          %v1751 = vld [vmem:[%s408 + $0x70] sm:$0xff]
          %v1752 = vld [vmem:[%s408 + $0x78] sm:$0xff]
          %v1753 = vadd.f32 %v1721, %v1737
          %v1754 = vadd.f32 %v1722, %v1738
          %v1755 = vadd.f32 %v1723, %v1739
          %v1756 = vadd.f32 %v1724, %v1740
          %v1757 = vadd.f32 %v1725, %v1741
          %v1758 = vadd.f32 %v1726, %v1742
          %v1759 = vadd.f32 %v1727, %v1743
          %v1760 = vadd.f32 %v1728, %v1744
          %v1761 = vadd.f32 %v1729, %v1745
          %v1762 = vadd.f32 %v1730, %v1746
          %v1763 = vadd.f32 %v1731, %v1747
          %v1764 = vadd.f32 %v1732, %v1748
          %v1765 = vadd.f32 %v1733, %v1749
          %v1766 = vadd.f32 %v1734, %v1750
          %v1767 = vadd.f32 %v1735, %v1751
          %v1768 = vadd.f32 %v1736, %v1752
          %v1769 = vmul.f32 %v1721, %v1737
          %v1770 = vmul.f32 %v1722, %v1738
          %v1771 = vmul.f32 %v1723, %v1739
          %v1772 = vmul.f32 %v1724, %v1740
          %v1773 = vmul.f32 %v1725, %v1741
          %v1774 = vmul.f32 %v1726, %v1742
          %v1775 = vmul.f32 %v1727, %v1743
          %v1776 = vmul.f32 %v1728, %v1744
          %v1777 = vmul.f32 %v1729, %v1745
          %v1778 = vmul.f32 %v1730, %v1746
          %v1779 = vmul.f32 %v1731, %v1747
          %v1780 = vmul.f32 %v1732, %v1748
          %v1781 = vmul.f32 %v1733, %v1749
          %v1782 = vmul.f32 %v1734, %v1750
          %v1783 = vmul.f32 %v1735, %v1751
          %v1784 = vmul.f32 %v1736, %v1752
          %v1785 = vadd.f32 %v1753, %v1769
          %v1786 = vadd.f32 %v1754, %v1770
          %v1787 = vadd.f32 %v1755, %v1771
          %v1788 = vadd.f32 %v1756, %v1772
          %v1789 = vadd.f32 %v1757, %v1773
          %v1790 = vadd.f32 %v1758, %v1774
          %v1791 = vadd.f32 %v1759, %v1775
          %v1792 = vadd.f32 %v1760, %v1776
          %v1793 = vadd.f32 %v1761, %v1777
          %v1794 = vadd.f32 %v1762, %v1778
          %v1795 = vadd.f32 %v1763, %v1779
          %v1796 = vadd.f32 %v1764, %v1780
          %v1797 = vadd.f32 %v1765, %v1781
          %v1798 = vadd.f32 %v1766, %v1782
          %v1799 = vadd.f32 %v1767, %v1783
          %v1800 = vadd.f32 %v1768, %v1784
          %v1801 = vpack.c.bf16 %v1786, %v1785
          %v1802 = vpack.c.bf16 %v1788, %v1787
          %v1803 = vpack.c.bf16 %v1790, %v1789
          %v1804 = vpack.c.bf16 %v1792, %v1791
          %v1805 = vpack.c.bf16 %v1794, %v1793
          %v1806 = vpack.c.bf16 %v1796, %v1795
          %v1807 = vpack.c.bf16 %v1798, %v1797
          %v1808 = vpack.c.bf16 %v1800, %v1799
          %v1817 = vunpack.c.l.b16 %v1801
          %v1818 = vunpack.c.h.b16 %v1801
          %v1819 = vunpack.c.l.b16 %v1802
          %v1820 = vunpack.c.h.b16 %v1802
          %v1821 = vunpack.c.l.b16 %v1803
          %v1822 = vunpack.c.h.b16 %v1803
          %v1823 = vunpack.c.l.b16 %v1804
          %v1824 = vunpack.c.h.b16 %v1804
          %v1825 = vunpack.c.l.b16 %v1805
          %v1826 = vunpack.c.h.b16 %v1805
          %v1827 = vunpack.c.l.b16 %v1806
          %v1828 = vunpack.c.h.b16 %v1806
          %v1829 = vunpack.c.l.b16 %v1807
          %v1830 = vunpack.c.h.b16 %v1807
          %v1831 = vunpack.c.l.b16 %v1808
          %v1832 = vunpack.c.h.b16 %v1808
          %v1833 = vpack.c.b16 %v1817, %v1817
          %v1834 = vpack.c.b16 %v1818, %v1818
          %v1835 = vpack.c.b16 %v1819, %v1819
          %v1836 = vpack.c.b16 %v1820, %v1820
          %v1837 = vpack.c.b16 %v1821, %v1821
          %v1838 = vpack.c.b16 %v1822, %v1822
          %v1839 = vpack.c.b16 %v1823, %v1823
          %v1840 = vpack.c.b16 %v1824, %v1824
          %v1841 = vpack.c.b16 %v1825, %v1825
          %v1842 = vpack.c.b16 %v1826, %v1826
          %v1843 = vpack.c.b16 %v1827, %v1827
          %v1844 = vpack.c.b16 %v1828, %v1828
          %v1845 = vpack.c.b16 %v1829, %v1829
          %v1846 = vpack.c.b16 %v1830, %v1830
          %v1847 = vpack.c.b16 %v1831, %v1831
          %v1848 = vpack.c.b16 %v1832, %v1832
          %vm1865 = vcmask 257024
          %1866 = vst.msk [vmem:[%s414] sm:$0xf] %vm1865, %v1833
          %1867 = vst.msk [vmem:[%s414 + $0x4] sm:$0xf] %vm1865, %v1834
          %1868 = vst.msk [vmem:[%s414 + $0x8] sm:$0xf] %vm1865, %v1835
          %1869 = vst.msk [vmem:[%s414 + $0xc] sm:$0xf] %vm1865, %v1836
          %1870 = vst.msk [vmem:[%s414 + $0x10] sm:$0xf] %vm1865, %v1837
          %1871 = vst.msk [vmem:[%s414 + $0x14] sm:$0xf] %vm1865, %v1838
          %1872 = vst.msk [vmem:[%s414 + $0x18] sm:$0xf] %vm1865, %v1839
          %1873 = vst.msk [vmem:[%s414 + $0x1c] sm:$0xf] %vm1865, %v1840
          %1874 = vst.msk [vmem:[%s414 + $0x20] sm:$0xf] %vm1865, %v1841
          %1875 = vst.msk [vmem:[%s414 + $0x24] sm:$0xf] %vm1865, %v1842
          %1876 = vst.msk [vmem:[%s414 + $0x28] sm:$0xf] %vm1865, %v1843
          %1877 = vst.msk [vmem:[%s414 + $0x2c] sm:$0xf] %vm1865, %v1844
          %1878 = vst.msk [vmem:[%s414 + $0x30] sm:$0xf] %vm1865, %v1845
          %1879 = vst.msk [vmem:[%s414 + $0x34] sm:$0xf] %vm1865, %v1846
          %1880 = vst.msk [vmem:[%s414 + $0x38] sm:$0xf] %vm1865, %v1847
          %1881 = vst.msk [vmem:[%s414 + $0x3c] sm:$0xf] %vm1865, %v1848
        $region93: #{tpu_custom_call.1} parent=80 // pred_fallthru
          _
        %s1882 = smul.u32 16, %s21
        %p1883 = scmp.lt.s32.totalorder %s1882, 31
        %s1884 = scalar_select %p1883, %s1882, 31
        %s1885 = smul.addr %s1884, 4
        %s1886 = scalar_lea.vmem %s6, %s1885
        // Predicated region
        $region94: #{tpu_custom_call.1} parent=80 // pred_check
          %p1887 = pneg %p190
        $region95: #{tpu_custom_call.1} parent=80 // pred_check_branch
          %1889 = sbr.rel (%p1887) target = $region97
        $region96: #{tpu_custom_call.1} parent=80 // pred_region
          %s1890 = smul.u32 16, %s21
        $region97: #{tpu_custom_call.1} parent=80 // pred_fallthru
          _
      $region81: #{tpu_custom_call.1} parent=5 // pred_fallthru
        _
      %p1891 = scmp.le.s32.totalorder 2, %s12
      // Predicated region
      $region98: #{tpu_custom_call.1} parent=5 // pred_check
        %p1892 = pneg %p1891
      $region99: #{tpu_custom_call.1} parent=5 // pred_check_branch
        %1894 = sbr.rel (%p1892) target = $region101
      $region100: #{tpu_custom_call.1} parent=5 // pred_region
        %s1895 = ssub.s32 %s12, 2
        // Predicated region
        $region102: #{tpu_custom_call.1} parent=100 // pred_check
          %p1896 = pneg %p196
        $region103: #{tpu_custom_call.1} parent=100 // pred_check_branch
          %1898 = sbr.rel (%p1896) target = $region105
        $region104: #{tpu_custom_call.1} parent=100 // pred_region
          %s1899 = smul.u32 16, %s23
          %p1900 = scmp.lt.s32.totalorder %s1899, 31
          %s1901 = scalar_select %p1900, %s1899, 31
          %s1902 = smul.addr %s1901, 4
          %s1903 = scalar_lea.vmem %s6, %s1902
        $region105: #{tpu_custom_call.1} parent=100 // pred_fallthru
          _
      $region101: #{tpu_custom_call.1} parent=5 // pred_fallthru
        _
    $region6: #{tpu_custom_call.1} parent=1 // loop_footer
      %s16 = sadd.s32 1, %s12
    $region7: #{tpu_custom_call.1} parent=1 // loop_footer_branch
      %11 = sbr.rel target = $region3
    $region8: #{tpu_custom_call.1} parent=1 // loop_exit
      _

</llo_original>
